<compile_context>
chip_gen: v7x
topology: tpu7x:2x2x1
jax: 0.10.0
libtpu: 0.0.40
codegen_flags: <defaults>
</compile_context>

<pallas_src>
import functools
import math

import jax
import jax.numpy as jnp
from jax import lax
from jax.experimental import pallas as pl
from jax.experimental.pallas import tpu as pltpu


def _gattn_kernel(top_k, H, E,
                  q_ref, k_ref, v_ref,
                  wqt_ref, bq_ref, wkt_ref, bk_ref, wvt_ref, bv_ref,
                  wot_ref, bo_ref,
                  out_ref, attn_ref):
    """One grid step == `block_b` batch elements; all compute stays in VMEM."""
    bblk, L, D = q_ref.shape
    S = k_ref.shape[1]
    neg_inf = jnp.float32(-jnp.inf)

    # ---- full-width projections: one (N, D) @ (D, D) bf16 matmul each -------
    def proj(x_ref, n_rows, wt_ref, b_ref, do_relu):
        x2 = x_ref[...].reshape(bblk * n_rows, D)            # bf16 activations
        y = jnp.dot(x2, wt_ref[...], preferred_element_type=jnp.float32)
        y = y + b_ref[...]                                    # (N, D) + (1, D)
        return jnp.maximum(y, 0.0) if do_relu else y

    Qf = proj(q_ref, L, wqt_ref, bq_ref, True)    # scale pre-folded into Wq/bq
    Kf = proj(k_ref, S, wkt_ref, bk_ref, False)
    Vf = proj(v_ref, S, wvt_ref, bv_ref, True)

    Qb = Qf.astype(jnp.bfloat16).reshape(bblk, L, D)
    Kb = Kf.astype(jnp.bfloat16).reshape(bblk, S, D)
    Vb = Vf.astype(jnp.bfloat16).reshape(bblk, S, D)

    ctx_parts = []
    for h in range(H):                                        # static, small
        lo, hi = h * E, (h + 1) * E
        qh = Qb[:, :, lo:hi]                                  # (bblk, L, E)
        kh = Kb[:, :, lo:hi]                                  # (bblk, S, E)
        vh = Vb[:, :, lo:hi]                                  # (bblk, S, E)

        # scores[b, l, s] = <q[b, l], k[b, s]>  (f32 MXU accumulation)
        scores = lax.dot_general(qh, kh, (((2,), (2,)), ((0,), (0,))),
                                 preferred_element_type=jnp.float32)

        # top_k-th largest per row, duplicates counted (torch.topk semantics).
        # Each pass removes the whole current-max group and decrements the
        # per-row remaining count; at most top_k-1 passes are needed.
        row_max = jnp.max(scores, axis=-1, keepdims=True)
        kth = row_max
        if top_k > 1:
            work = scores
            m = row_max
            remaining = jnp.full(row_max.shape, float(top_k), jnp.float32)
            for _ in range(top_k - 1):
                cnt = jnp.sum((work == m).astype(jnp.float32),
                              axis=-1, keepdims=True)
                not_done = remaining > cnt
                remaining = remaining - cnt
                work = jnp.where(work == m, neg_inf, work)
                m = jnp.max(work, axis=-1, keepdims=True)
                kth = jnp.where(not_done, m, kth)

        masked = jnp.where(scores < kth, neg_inf, scores)
        # max(masked) == row_max (the row max is never removed) -> reuse it.
        e = jnp.exp(masked - row_max)
        a = e / jnp.sum(e, axis=-1, keepdims=True)            # (bblk, L, S) f32

        attn_ref[:, h] = a                                    # lane-dense store

        ctx_parts.append(lax.dot_general(a.astype(jnp.bfloat16), vh,
                                         (((2,), (1,)), ((0,), (0,))),
                                         preferred_element_type=jnp.float32))

    # ---- fused out-projection: contraction width D (full MXU tile) ----------
    ctx = jnp.concatenate(ctx_parts, axis=-1).reshape(bblk * L, D)
    out = jnp.dot(ctx.astype(jnp.bfloat16), wot_ref[...],
                  preferred_element_type=jnp.float32) + bo_ref[...]
    out_ref[...] = out.reshape(bblk, L, D).astype(out_ref.dtype)


def _vmem_bytes_estimate(block_b, L, S, D, H, out_bytes):
    """Rough per-step VMEM footprint (double-buffered I/O + live intermediates)."""
    io = 2 * (block_b * L * D * 2            # q (bf16)
              + 2 * block_b * S * D * 2      # k, v (bf16)
              + block_b * L * D * out_bytes  # out block
              + block_b * H * L * S * 4)     # attention block (f32)
    weights = 2 * (4 * D * D * 2 + 4 * D * 4)
    scratch = (block_b * (L + 2 * S) * D * 4     # f32 projections
               + 4 * block_b * L * S * 4         # per-head score/softmax temps
               + 3 * block_b * L * D * 4)        # ctx parts + concat + out
    return io + weights + scratch


def gattn_pallas(q, k, v, params, n_heads, top_k,
                 block_b=None, vmem_limit_bytes=None):
    B, L, D = q.shape
    S = k.shape[1]
    H = n_heads
    assert D % H == 0
    E = D // H
    assert 1 <= top_k <= S, "top_k must satisfy 1 <= top_k <= S (as torch.topk)"
    (Wq, bq), (Wk, bk), (Wv, bv), (Wo, bo) = params   # W: (out, in), b: (D,)
    scale = 1.0 / math.sqrt(E)

    # Generation-aware VMEM limit: v5e/v6e have 128 MiB, v7x only 64 MiB.
    if vmem_limit_bytes is None:
        try:
            cap = int(pltpu.get_tpu_info().vmem_capacity_bytes)
        except Exception:
            cap = 64 * 1024 * 1024
        vmem_limit_bytes = max(32 * 1024 * 1024,
                               min(int(0.75 * cap), 100 * 1024 * 1024))

    out_bytes = jnp.dtype(q.dtype).itemsize
    if block_b is None:
        budget = int(0.8 * vmem_limit_bytes)
        cands = [d for d in range(1, B + 1) if B % d == 0]
        fit = [d for d in cands
               if _vmem_bytes_estimate(d, L, S, D, H, out_bytes) <= budget] or [1]
        pref = [d for d in fit if B // d >= 2]   # keep >= 2 grid steps (megacore)
        block_b = max(pref) if pref else max(fit)

    mxu = jnp.bfloat16
    # y = x @ W^T + b with the 1/sqrt(E) softmax scale folded into Wq / bq
    # (valid since scale > 0: scale*relu(xW+b) == relu(x(sW)+(sb))).
    wq_t = (Wq * scale).T.astype(mxu)
    wk_t = Wk.T.astype(mxu)
    wv_t = Wv.T.astype(mxu)
    wo_t = Wo.T.astype(mxu)
    bq_2 = (bq * scale).reshape(1, D).astype(jnp.float32)
    bk_2 = bk.reshape(1, D).astype(jnp.float32)
    bv_2 = bv.reshape(1, D).astype(jnp.float32)
    bo_2 = bo.reshape(1, D).astype(jnp.float32)

    kernel = functools.partial(_gattn_kernel, top_k, H, E)

    w_spec = pl.BlockSpec((D, D), lambda i: (0, 0))
    b_spec = pl.BlockSpec((1, D), lambda i: (0, 0))

    flops = 2 * B * (2 * L * D * D + 2 * S * D * D + 2 * L * S * D)
    bytes_accessed = (2 * B * (L + 2 * S) * D            # bf16 q, k, v
                      + 4 * D * D * 2 + 4 * D * 4        # bf16 weights + f32 biases
                      + out_bytes * B * L * D            # out
                      + 4 * B * H * L * S)               # attention map
    cost = pl.CostEstimate(flops=flops, transcendentals=B * H * L * S,
                           bytes_accessed=bytes_accessed)

    out, attn = pl.pallas_call(
        kernel,
        out_shape=(jax.ShapeDtypeStruct((B, L, D), q.dtype),
                   jax.ShapeDtypeStruct((B, H, L, S), jnp.float32)),
        grid=(B // block_b,),
        in_specs=[
            pl.BlockSpec((block_b, L, D), lambda i: (i, 0, 0)),   # queries
            pl.BlockSpec((block_b, S, D), lambda i: (i, 0, 0)),   # keys
            pl.BlockSpec((block_b, S, D), lambda i: (i, 0, 0)),   # values
            w_spec, b_spec,                                       # Wq^T (scaled), bq
            w_spec, b_spec,                                       # Wk^T, bk
            w_spec, b_spec,                                       # Wv^T, bv
            w_spec, b_spec,                                       # Wo^T, bo
        ],
        out_specs=(
            pl.BlockSpec((block_b, L, D), lambda i: (i, 0, 0)),
            pl.BlockSpec((block_b, H, L, S), lambda i: (i, 0, 0, 0)),
        ),
        compiler_params=pltpu.CompilerParams(
            dimension_semantics=("parallel",),
            vmem_limit_bytes=vmem_limit_bytes),
        cost_estimate=cost,
    )(q.astype(mxu), k.astype(mxu), v.astype(mxu),
      wq_t, bq_2, wk_t, bk_2, wv_t, bv_2, wo_t, bo_2)
    return out, attn


def gattn_reference(q, k, v, params, n_heads, top_k, mxu_dtype=jnp.float32):
    """Plain-JAX reference mirroring the PyTorch forward.

    With mxu_dtype=bf16 it applies the same matmul-operand casts (f32
    accumulation) and the same scale-into-Wq fold as the kernel, so the
    comparison is rounding-tight; the fold is mathematically exact (scale > 0),
    so with mxu_dtype=f32 this matches the PyTorch module."""
    (Wq, bq), (Wk, bk), (Wv, bv), (Wo, bo) = params
    B, L, D = q.shape
    S = k.shape[1]
    H = n_heads
    E = D // H
    scale = 1.0 / math.sqrt(E)
    c = lambda x: x.astype(mxu_dtype)

    def lin(x, W, b):
        return jnp.dot(c(x), c(W.T), preferred_element_type=jnp.float32) + b

    Q = jax.nn.relu(lin(q, Wq * scale, bq * scale))
    K = lin(k, Wk, bk)
    V = jax.nn.relu(lin(v, Wv, bv))
    Q = Q.reshape(B, L, H, E)
    K = K.reshape(B, S, H, E)
    V = V.reshape(B, S, H, E)
    scores = jnp.einsum('blhe,bshe->bhls', c(Q), c(K),
                        preferred_element_type=jnp.float32)
    kth = lax.top_k(scores, top_k)[0][..., -1:]
    masked = jnp.where(scores < kth, -jnp.inf, scores)
    A = jax.nn.softmax(masked, axis=-1)
    ctx = jnp.einsum('bhls,bshd->blhd', c(A), c(V),
                     preferred_element_type=jnp.float32).reshape(B, L, D)
    out = jnp.dot(c(ctx), c(Wo.T), preferred_element_type=jnp.float32) + bo
    return out, A


def _init_linear(key, d_model):
    """nn.Linear-style init: U(-1/sqrt(fan_in), 1/sqrt(fan_in))."""
    kw, kb = jax.random.split(key)
    bound = 1.0 / math.sqrt(d_model)
    W = jax.random.uniform(kw, (d_model, d_model), jnp.float32, -bound, bound)
    b = jax.random.uniform(kb, (d_model,), jnp.float32, -bound, bound)
    return W, b


if __name__ == "__main__":
    B, L, S, d_model, n_heads, top_k = 2, 8, 8, 32, 4, 2

    root = jax.random.PRNGKey(0)
    kq, kk, kv, k1, k2, k3, k4 = jax.random.split(root, 7)

    queries = jax.random.normal(kq, (B, L, d_model), jnp.float32)
    keys = jax.random.normal(kk, (B, S, d_model), jnp.float32)
    values = jax.random.normal(kv, (B, S, d_model), jnp.float32)

    params = (_init_linear(k1, d_model),   # query_projection
              _init_linear(k2, d_model),   # key_projection
              _init_linear(k3, d_model),   # value_projection
              _init_linear(k4, d_model))   # out_projection

    out, attn = gattn_pallas(queries, keys, values, params, n_heads, top_k)
    jax.block_until_ready((out, attn))

    # Reference with the same bf16 MXU-operand precision as the kernel.
    out_ref, attn_ref = gattn_reference(queries, keys, values, params,
                                        n_heads, top_k, mxu_dtype=jnp.bfloat16)

    assert out.shape == (B, L, d_model) and attn.shape == (B, n_heads, L, S)
    assert jnp.allclose(out, out_ref, atol=2e-3, rtol=2e-3)
    assert jnp.allclose(attn, attn_ref, atol=2e-3, rtol=2e-3)

    print("KERNEL_OK")
</pallas_src>

<mosaic_0001>
module attributes {stable_mosaic.version = 11 : i64} {
  func.func @_gattn_kernel(%arg0: i32, %arg1: memref<1x8x32xbf16, #tpu.memory_space<vmem>>, %arg2: memref<1x8x32xbf16, #tpu.memory_space<vmem>>, %arg3: memref<1x8x32xbf16, #tpu.memory_space<vmem>>, %arg4: memref<32x32xbf16, #tpu.memory_space<vmem>>, %arg5: memref<1x32xf32, #tpu.memory_space<vmem>>, %arg6: memref<32x32xbf16, #tpu.memory_space<vmem>>, %arg7: memref<1x32xf32, #tpu.memory_space<vmem>>, %arg8: memref<32x32xbf16, #tpu.memory_space<vmem>>, %arg9: memref<1x32xf32, #tpu.memory_space<vmem>>, %arg10: memref<32x32xbf16, #tpu.memory_space<vmem>>, %arg11: memref<1x32xf32, #tpu.memory_space<vmem>>, %arg12: memref<1x8x32xf32, #tpu.memory_space<vmem>>, %arg13: memref<1x4x8x8xf32, #tpu.memory_space<vmem>>) attributes {dimension_semantics = [#tpu.dimension_semantics<parallel>], iteration_bounds = array<i64: 2>, scalar_prefetch = 0 : i64, scratch_operands = 0 : i64, tpu.core_type = #tpu.core_type<tc>, window_params = [{transform_indices = @transform_0, window_bounds = array<i64: 1, 8, 32>}, {transform_indices = @transform_1, window_bounds = array<i64: 1, 8, 32>}, {transform_indices = @transform_2, window_bounds = array<i64: 1, 8, 32>}, {pipeline_mode = #tpu.pipeline_mode<synchronous>, transform_indices = @transform_3, window_bounds = array<i64: 32, 32>}, {pipeline_mode = #tpu.pipeline_mode<synchronous>, transform_indices = @transform_4, window_bounds = array<i64: 1, 32>}, {pipeline_mode = #tpu.pipeline_mode<synchronous>, transform_indices = @transform_5, window_bounds = array<i64: 32, 32>}, {pipeline_mode = #tpu.pipeline_mode<synchronous>, transform_indices = @transform_6, window_bounds = array<i64: 1, 32>}, {pipeline_mode = #tpu.pipeline_mode<synchronous>, transform_indices = @transform_7, window_bounds = array<i64: 32, 32>}, {pipeline_mode = #tpu.pipeline_mode<synchronous>, transform_indices = @transform_8, window_bounds = array<i64: 1, 32>}, {pipeline_mode = #tpu.pipeline_mode<synchronous>, transform_indices = @transform_9, window_bounds = array<i64: 32, 32>}, {pipeline_mode = #tpu.pipeline_mode<synchronous>, transform_indices = @transform_10, window_bounds = array<i64: 1, 32>}, {transform_indices = @transform_11, window_bounds = array<i64: 1, 8, 32>}, {transform_indices = @transform_12, window_bounds = array<i64: 1, 4, 8, 8>}]} {
    %c0 = arith.constant 0 : index
    %c0_0 = arith.constant 0 : index
    %c0_1 = arith.constant 0 : index
    %0 = vector.load %arg1[%c0, %c0_0, %c0_1] : memref<1x8x32xbf16, #tpu.memory_space<vmem>>, vector<1x8x32xbf16>
    %1 = vector.shape_cast %0 : vector<1x8x32xbf16> to vector<8x32xbf16>
    %c0_2 = arith.constant 0 : index
    %c0_3 = arith.constant 0 : index
    %2 = vector.load %arg4[%c0_2, %c0_3] : memref<32x32xbf16, #tpu.memory_space<vmem>>, vector<32x32xbf16>
    %cst = arith.constant dense<0.000000e+00> : vector<8x32xf32>
    %3 = tpu.matmul %1, %2, %cst {dimension_numbers = #tpu.dot_dimension_numbers<[1], [0], [0], [1], [0, 0, 1, 1], [], []>} : vector<8x32xbf16>, vector<32x32xbf16>, vector<8x32xf32> -> vector<8x32xf32>
    %c0_4 = arith.constant 0 : index
    %c0_5 = arith.constant 0 : index
    %4 = vector.load %arg5[%c0_4, %c0_5] : memref<1x32xf32, #tpu.memory_space<vmem>>, vector<1x32xf32>
    %5 = vector.broadcast %4 : vector<1x32xf32> to vector<8x32xf32>
    %6 = arith.addf %3, %5 : vector<8x32xf32>
    %cst_6 = arith.constant 0.000000e+00 : f32
    %7 = vector.broadcast %cst_6 : f32 to vector<8x32xf32>
    %8 = arith.maximumf %6, %7 : vector<8x32xf32>
    %c0_7 = arith.constant 0 : index
    %c0_8 = arith.constant 0 : index
    %c0_9 = arith.constant 0 : index
    %9 = vector.load %arg2[%c0_7, %c0_8, %c0_9] : memref<1x8x32xbf16, #tpu.memory_space<vmem>>, vector<1x8x32xbf16>
    %10 = vector.shape_cast %9 : vector<1x8x32xbf16> to vector<8x32xbf16>
    %c0_10 = arith.constant 0 : index
    %c0_11 = arith.constant 0 : index
    %11 = vector.load %arg6[%c0_10, %c0_11] : memref<32x32xbf16, #tpu.memory_space<vmem>>, vector<32x32xbf16>
    %cst_12 = arith.constant dense<0.000000e+00> : vector<8x32xf32>
    %12 = tpu.matmul %10, %11, %cst_12 {dimension_numbers = #tpu.dot_dimension_numbers<[1], [0], [0], [1], [0, 0, 1, 1], [], []>} : vector<8x32xbf16>, vector<32x32xbf16>, vector<8x32xf32> -> vector<8x32xf32>
    %c0_13 = arith.constant 0 : index
    %c0_14 = arith.constant 0 : index
    %13 = vector.load %arg7[%c0_13, %c0_14] : memref<1x32xf32, #tpu.memory_space<vmem>>, vector<1x32xf32>
    %14 = vector.broadcast %13 : vector<1x32xf32> to vector<8x32xf32>
    %15 = arith.addf %12, %14 : vector<8x32xf32>
    %c0_15 = arith.constant 0 : index
    %c0_16 = arith.constant 0 : index
    %c0_17 = arith.constant 0 : index
    %16 = vector.load %arg3[%c0_15, %c0_16, %c0_17] : memref<1x8x32xbf16, #tpu.memory_space<vmem>>, vector<1x8x32xbf16>
    %17 = vector.shape_cast %16 : vector<1x8x32xbf16> to vector<8x32xbf16>
    %c0_18 = arith.constant 0 : index
    %c0_19 = arith.constant 0 : index
    %18 = vector.load %arg8[%c0_18, %c0_19] : memref<32x32xbf16, #tpu.memory_space<vmem>>, vector<32x32xbf16>
    %cst_20 = arith.constant dense<0.000000e+00> : vector<8x32xf32>
    %19 = tpu.matmul %17, %18, %cst_20 {dimension_numbers = #tpu.dot_dimension_numbers<[1], [0], [0], [1], [0, 0, 1, 1], [], []>} : vector<8x32xbf16>, vector<32x32xbf16>, vector<8x32xf32> -> vector<8x32xf32>
    %c0_21 = arith.constant 0 : index
    %c0_22 = arith.constant 0 : index
    %20 = vector.load %arg9[%c0_21, %c0_22] : memref<1x32xf32, #tpu.memory_space<vmem>>, vector<1x32xf32>
    %21 = vector.broadcast %20 : vector<1x32xf32> to vector<8x32xf32>
    %22 = arith.addf %19, %21 : vector<8x32xf32>
    %cst_23 = arith.constant 0.000000e+00 : f32
    %23 = vector.broadcast %cst_23 : f32 to vector<8x32xf32>
    %24 = arith.maximumf %22, %23 : vector<8x32xf32>
    %25 = arith.truncf %8 : vector<8x32xf32> to vector<8x32xbf16>
    %26 = vector.shape_cast %25 : vector<8x32xbf16> to vector<1x8x32xbf16>
    %27 = arith.truncf %15 : vector<8x32xf32> to vector<8x32xbf16>
    %28 = vector.shape_cast %27 : vector<8x32xbf16> to vector<1x8x32xbf16>
    %29 = arith.truncf %24 : vector<8x32xf32> to vector<8x32xbf16>
    %30 = vector.shape_cast %29 : vector<8x32xbf16> to vector<1x8x32xbf16>
    %31 = vector.extract_strided_slice %26 {offsets = [0, 0, 0], sizes = [1, 8, 8], strides = [1, 1, 1]} : vector<1x8x32xbf16> to vector<1x8x8xbf16>
    %32 = vector.extract_strided_slice %28 {offsets = [0, 0, 0], sizes = [1, 8, 8], strides = [1, 1, 1]} : vector<1x8x32xbf16> to vector<1x8x8xbf16>
    %33 = vector.extract_strided_slice %30 {offsets = [0, 0, 0], sizes = [1, 8, 8], strides = [1, 1, 1]} : vector<1x8x32xbf16> to vector<1x8x8xbf16>
    %cst_24 = arith.constant dense<0.000000e+00> : vector<1x8x8xf32>
    %34 = tpu.matmul %31, %32, %cst_24 {dimension_numbers = #tpu.dot_dimension_numbers<[2], [2], [1], [1], [0, 0, 0, 1, 1, 1], [0], [0]>} : vector<1x8x8xbf16>, vector<1x8x8xbf16>, vector<1x8x8xf32> -> vector<1x8x8xf32>
    %cst_25 = arith.constant dense<0xFF800000> : vector<1x8xf32>
    %35 = vector.multi_reduction <maximumf>, %34, %cst_25 [2] : vector<1x8x8xf32> to vector<1x8xf32>
    %36 = vector.shape_cast %35 : vector<1x8xf32> to vector<1x8x1xf32>
    %cst_26 = arith.constant 2.000000e+00 : f32
    %37 = vector.broadcast %cst_26 : f32 to vector<1x8x1xf32>
    %38 = vector.broadcast %36 : vector<1x8x1xf32> to vector<1x8x8xf32>
    %39 = arith.cmpf oeq, %34, %38 : vector<1x8x8xf32>
    %40 = arith.extui %39 : vector<1x8x8xi1> to vector<1x8x8xi32>
    %41 = arith.sitofp %40 : vector<1x8x8xi32> to vector<1x8x8xf32>
    %cst_27 = arith.constant dense<0.000000e+00> : vector<1x8xf32>
    %42 = vector.multi_reduction <add>, %41, %cst_27 [2] : vector<1x8x8xf32> to vector<1x8xf32>
    %43 = vector.shape_cast %42 : vector<1x8xf32> to vector<1x8x1xf32>
    %44 = arith.cmpf ogt, %37, %43 : vector<1x8x1xf32>
    %45 = vector.broadcast %36 : vector<1x8x1xf32> to vector<1x8x8xf32>
    %46 = arith.cmpf oeq, %34, %45 : vector<1x8x8xf32>
    %cst_28 = arith.constant 0xFF800000 : f32
    %47 = vector.broadcast %cst_28 : f32 to vector<1x8x8xf32>
    %48 = arith.select %46, %47, %34 : vector<1x8x8xi1>, vector<1x8x8xf32>
    %cst_29 = arith.constant dense<0xFF800000> : vector<1x8xf32>
    %49 = vector.multi_reduction <maximumf>, %48, %cst_29 [2] : vector<1x8x8xf32> to vector<1x8xf32>
    %50 = vector.shape_cast %49 : vector<1x8xf32> to vector<1x8x1xf32>
    %51 = arith.select %44, %50, %36 : vector<1x8x1xi1>, vector<1x8x1xf32>
    %52 = vector.broadcast %51 : vector<1x8x1xf32> to vector<1x8x8xf32>
    %53 = arith.cmpf olt, %34, %52 : vector<1x8x8xf32>
    %cst_30 = arith.constant 0xFF800000 : f32
    %54 = vector.broadcast %cst_30 : f32 to vector<1x8x8xf32>
    %55 = arith.select %53, %54, %34 : vector<1x8x8xi1>, vector<1x8x8xf32>
    %56 = vector.broadcast %36 : vector<1x8x1xf32> to vector<1x8x8xf32>
    %57 = arith.subf %55, %56 : vector<1x8x8xf32>
    %58 = math.exp %57 : vector<1x8x8xf32>
    %cst_31 = arith.constant dense<0.000000e+00> : vector<1x8xf32>
    %59 = vector.multi_reduction <add>, %58, %cst_31 [2] : vector<1x8x8xf32> to vector<1x8xf32>
    %60 = vector.shape_cast %59 : vector<1x8xf32> to vector<1x8x1xf32>
    %61 = vector.broadcast %60 : vector<1x8x1xf32> to vector<1x8x8xf32>
    %62 = arith.divf %58, %61 : vector<1x8x8xf32>
    %c0_32 = arith.constant 0 : index
    %c0_33 = arith.constant 0 : index
    %c0_34 = arith.constant 0 : index
    %c0_35 = arith.constant 0 : index
    %63 = vector.load %arg13[%c0_32, %c0_33, %c0_34, %c0_35] : memref<1x4x8x8xf32, #tpu.memory_space<vmem>>, vector<1x1x8x8xf32>
    %64 = vector.shape_cast %63 : vector<1x1x8x8xf32> to vector<1x8x8xf32>
    %65 = vector.shape_cast %62 : vector<1x8x8xf32> to vector<1x1x8x8xf32>
    tpu.vector_store %arg13[%c0_32, %c0_33, %c0_34, %c0_35], %65 {strides = array<i32>} : memref<1x4x8x8xf32, #tpu.memory_space<vmem>>, vector<1x1x8x8xf32>,
    %66 = arith.truncf %62 : vector<1x8x8xf32> to vector<1x8x8xbf16>
    %cst_36 = arith.constant dense<0.000000e+00> : vector<1x8x8xf32>
    %67 = tpu.matmul %66, %33, %cst_36 {dimension_numbers = #tpu.dot_dimension_numbers<[2], [1], [1], [2], [0, 0, 0, 1, 1, 2], [0], [0]>} : vector<1x8x8xbf16>, vector<1x8x8xbf16>, vector<1x8x8xf32> -> vector<1x8x8xf32>
    %68 = vector.extract_strided_slice %26 {offsets = [0, 0, 8], sizes = [1, 8, 8], strides = [1, 1, 1]} : vector<1x8x32xbf16> to vector<1x8x8xbf16>
    %69 = vector.extract_strided_slice %28 {offsets = [0, 0, 8], sizes = [1, 8, 8], strides = [1, 1, 1]} : vector<1x8x32xbf16> to vector<1x8x8xbf16>
    %70 = vector.extract_strided_slice %30 {offsets = [0, 0, 8], sizes = [1, 8, 8], strides = [1, 1, 1]} : vector<1x8x32xbf16> to vector<1x8x8xbf16>
    %cst_37 = arith.constant dense<0.000000e+00> : vector<1x8x8xf32>
    %71 = tpu.matmul %68, %69, %cst_37 {dimension_numbers = #tpu.dot_dimension_numbers<[2], [2], [1], [1], [0, 0, 0, 1, 1, 1], [0], [0]>} : vector<1x8x8xbf16>, vector<1x8x8xbf16>, vector<1x8x8xf32> -> vector<1x8x8xf32>
    %cst_38 = arith.constant dense<0xFF800000> : vector<1x8xf32>
    %72 = vector.multi_reduction <maximumf>, %71, %cst_38 [2] : vector<1x8x8xf32> to vector<1x8xf32>
    %73 = vector.shape_cast %72 : vector<1x8xf32> to vector<1x8x1xf32>
    %cst_39 = arith.constant 2.000000e+00 : f32
    %74 = vector.broadcast %cst_39 : f32 to vector<1x8x1xf32>
    %75 = vector.broadcast %73 : vector<1x8x1xf32> to vector<1x8x8xf32>
    %76 = arith.cmpf oeq, %71, %75 : vector<1x8x8xf32>
    %77 = arith.extui %76 : vector<1x8x8xi1> to vector<1x8x8xi32>
    %78 = arith.sitofp %77 : vector<1x8x8xi32> to vector<1x8x8xf32>
    %cst_40 = arith.constant dense<0.000000e+00> : vector<1x8xf32>
    %79 = vector.multi_reduction <add>, %78, %cst_40 [2] : vector<1x8x8xf32> to vector<1x8xf32>
    %80 = vector.shape_cast %79 : vector<1x8xf32> to vector<1x8x1xf32>
    %81 = arith.cmpf ogt, %74, %80 : vector<1x8x1xf32>
    %82 = vector.broadcast %73 : vector<1x8x1xf32> to vector<1x8x8xf32>
    %83 = arith.cmpf oeq, %71, %82 : vector<1x8x8xf32>
    %cst_41 = arith.constant 0xFF800000 : f32
    %84 = vector.broadcast %cst_41 : f32 to vector<1x8x8xf32>
    %85 = arith.select %83, %84, %71 : vector<1x8x8xi1>, vector<1x8x8xf32>
    %cst_42 = arith.constant dense<0xFF800000> : vector<1x8xf32>
    %86 = vector.multi_reduction <maximumf>, %85, %cst_42 [2] : vector<1x8x8xf32> to vector<1x8xf32>
    %87 = vector.shape_cast %86 : vector<1x8xf32> to vector<1x8x1xf32>
    %88 = arith.select %81, %87, %73 : vector<1x8x1xi1>, vector<1x8x1xf32>
    %89 = vector.broadcast %88 : vector<1x8x1xf32> to vector<1x8x8xf32>
    %90 = arith.cmpf olt, %71, %89 : vector<1x8x8xf32>
    %cst_43 = arith.constant 0xFF800000 : f32
    %91 = vector.broadcast %cst_43 : f32 to vector<1x8x8xf32>
    %92 = arith.select %90, %91, %71 : vector<1x8x8xi1>, vector<1x8x8xf32>
    %93 = vector.broadcast %73 : vector<1x8x1xf32> to vector<1x8x8xf32>
    %94 = arith.subf %92, %93 : vector<1x8x8xf32>
    %95 = math.exp %94 : vector<1x8x8xf32>
    %cst_44 = arith.constant dense<0.000000e+00> : vector<1x8xf32>
    %96 = vector.multi_reduction <add>, %95, %cst_44 [2] : vector<1x8x8xf32> to vector<1x8xf32>
    %97 = vector.shape_cast %96 : vector<1x8xf32> to vector<1x8x1xf32>
    %98 = vector.broadcast %97 : vector<1x8x1xf32> to vector<1x8x8xf32>
    %99 = arith.divf %95, %98 : vector<1x8x8xf32>
    %c0_45 = arith.constant 0 : index
    %c1 = arith.constant 1 : index
    %c0_46 = arith.constant 0 : index
    %c0_47 = arith.constant 0 : index
    %100 = vector.load %arg13[%c0_45, %c1, %c0_46, %c0_47] : memref<1x4x8x8xf32, #tpu.memory_space<vmem>>, vector<1x1x8x8xf32>
    %101 = vector.shape_cast %100 : vector<1x1x8x8xf32> to vector<1x8x8xf32>
    %102 = vector.shape_cast %99 : vector<1x8x8xf32> to vector<1x1x8x8xf32>
    tpu.vector_store %arg13[%c0_45, %c1, %c0_46, %c0_47], %102 {strides = array<i32>} : memref<1x4x8x8xf32, #tpu.memory_space<vmem>>, vector<1x1x8x8xf32>,
    %103 = arith.truncf %99 : vector<1x8x8xf32> to vector<1x8x8xbf16>
    %cst_48 = arith.constant dense<0.000000e+00> : vector<1x8x8xf32>
    %104 = tpu.matmul %103, %70, %cst_48 {dimension_numbers = #tpu.dot_dimension_numbers<[2], [1], [1], [2], [0, 0, 0, 1, 1, 2], [0], [0]>} : vector<1x8x8xbf16>, vector<1x8x8xbf16>, vector<1x8x8xf32> -> vector<1x8x8xf32>
    %105 = vector.extract_strided_slice %26 {offsets = [0, 0, 16], sizes = [1, 8, 8], strides = [1, 1, 1]} : vector<1x8x32xbf16> to vector<1x8x8xbf16>
    %106 = vector.extract_strided_slice %28 {offsets = [0, 0, 16], sizes = [1, 8, 8], strides = [1, 1, 1]} : vector<1x8x32xbf16> to vector<1x8x8xbf16>
    %107 = vector.extract_strided_slice %30 {offsets = [0, 0, 16], sizes = [1, 8, 8], strides = [1, 1, 1]} : vector<1x8x32xbf16> to vector<1x8x8xbf16>
    %cst_49 = arith.constant dense<0.000000e+00> : vector<1x8x8xf32>
    %108 = tpu.matmul %105, %106, %cst_49 {dimension_numbers = #tpu.dot_dimension_numbers<[2], [2], [1], [1], [0, 0, 0, 1, 1, 1], [0], [0]>} : vector<1x8x8xbf16>, vector<1x8x8xbf16>, vector<1x8x8xf32> -> vector<1x8x8xf32>
    %cst_50 = arith.constant dense<0xFF800000> : vector<1x8xf32>
    %109 = vector.multi_reduction <maximumf>, %108, %cst_50 [2] : vector<1x8x8xf32> to vector<1x8xf32>
    %110 = vector.shape_cast %109 : vector<1x8xf32> to vector<1x8x1xf32>
    %cst_51 = arith.constant 2.000000e+00 : f32
    %111 = vector.broadcast %cst_51 : f32 to vector<1x8x1xf32>
    %112 = vector.broadcast %110 : vector<1x8x1xf32> to vector<1x8x8xf32>
    %113 = arith.cmpf oeq, %108, %112 : vector<1x8x8xf32>
    %114 = arith.extui %113 : vector<1x8x8xi1> to vector<1x8x8xi32>
    %115 = arith.sitofp %114 : vector<1x8x8xi32> to vector<1x8x8xf32>
    %cst_52 = arith.constant dense<0.000000e+00> : vector<1x8xf32>
    %116 = vector.multi_reduction <add>, %115, %cst_52 [2] : vector<1x8x8xf32> to vector<1x8xf32>
    %117 = vector.shape_cast %116 : vector<1x8xf32> to vector<1x8x1xf32>
    %118 = arith.cmpf ogt, %111, %117 : vector<1x8x1xf32>
    %119 = vector.broadcast %110 : vector<1x8x1xf32> to vector<1x8x8xf32>
    %120 = arith.cmpf oeq, %108, %119 : vector<1x8x8xf32>
    %cst_53 = arith.constant 0xFF800000 : f32
    %121 = vector.broadcast %cst_53 : f32 to vector<1x8x8xf32>
    %122 = arith.select %120, %121, %108 : vector<1x8x8xi1>, vector<1x8x8xf32>
    %cst_54 = arith.constant dense<0xFF800000> : vector<1x8xf32>
    %123 = vector.multi_reduction <maximumf>, %122, %cst_54 [2] : vector<1x8x8xf32> to vector<1x8xf32>
    %124 = vector.shape_cast %123 : vector<1x8xf32> to vector<1x8x1xf32>
    %125 = arith.select %118, %124, %110 : vector<1x8x1xi1>, vector<1x8x1xf32>
    %126 = vector.broadcast %125 : vector<1x8x1xf32> to vector<1x8x8xf32>
    %127 = arith.cmpf olt, %108, %126 : vector<1x8x8xf32>
    %cst_55 = arith.constant 0xFF800000 : f32
    %128 = vector.broadcast %cst_55 : f32 to vector<1x8x8xf32>
    %129 = arith.select %127, %128, %108 : vector<1x8x8xi1>, vector<1x8x8xf32>
    %130 = vector.broadcast %110 : vector<1x8x1xf32> to vector<1x8x8xf32>
    %131 = arith.subf %129, %130 : vector<1x8x8xf32>
    %132 = math.exp %131 : vector<1x8x8xf32>
    %cst_56 = arith.constant dense<0.000000e+00> : vector<1x8xf32>
    %133 = vector.multi_reduction <add>, %132, %cst_56 [2] : vector<1x8x8xf32> to vector<1x8xf32>
    %134 = vector.shape_cast %133 : vector<1x8xf32> to vector<1x8x1xf32>
    %135 = vector.broadcast %134 : vector<1x8x1xf32> to vector<1x8x8xf32>
    %136 = arith.divf %132, %135 : vector<1x8x8xf32>
    %c0_57 = arith.constant 0 : index
    %c2 = arith.constant 2 : index
    %c0_58 = arith.constant 0 : index
    %c0_59 = arith.constant 0 : index
    %137 = vector.load %arg13[%c0_57, %c2, %c0_58, %c0_59] : memref<1x4x8x8xf32, #tpu.memory_space<vmem>>, vector<1x1x8x8xf32>
    %138 = vector.shape_cast %137 : vector<1x1x8x8xf32> to vector<1x8x8xf32>
    %139 = vector.shape_cast %136 : vector<1x8x8xf32> to vector<1x1x8x8xf32>
    tpu.vector_store %arg13[%c0_57, %c2, %c0_58, %c0_59], %139 {strides = array<i32>} : memref<1x4x8x8xf32, #tpu.memory_space<vmem>>, vector<1x1x8x8xf32>,
    %140 = arith.truncf %136 : vector<1x8x8xf32> to vector<1x8x8xbf16>
    %cst_60 = arith.constant dense<0.000000e+00> : vector<1x8x8xf32>
    %141 = tpu.matmul %140, %107, %cst_60 {dimension_numbers = #tpu.dot_dimension_numbers<[2], [1], [1], [2], [0, 0, 0, 1, 1, 2], [0], [0]>} : vector<1x8x8xbf16>, vector<1x8x8xbf16>, vector<1x8x8xf32> -> vector<1x8x8xf32>
    %142 = vector.extract_strided_slice %26 {offsets = [0, 0, 24], sizes = [1, 8, 8], strides = [1, 1, 1]} : vector<1x8x32xbf16> to vector<1x8x8xbf16>
    %143 = vector.extract_strided_slice %28 {offsets = [0, 0, 24], sizes = [1, 8, 8], strides = [1, 1, 1]} : vector<1x8x32xbf16> to vector<1x8x8xbf16>
    %144 = vector.extract_strided_slice %30 {offsets = [0, 0, 24], sizes = [1, 8, 8], strides = [1, 1, 1]} : vector<1x8x32xbf16> to vector<1x8x8xbf16>
    %cst_61 = arith.constant dense<0.000000e+00> : vector<1x8x8xf32>
    %145 = tpu.matmul %142, %143, %cst_61 {dimension_numbers = #tpu.dot_dimension_numbers<[2], [2], [1], [1], [0, 0, 0, 1, 1, 1], [0], [0]>} : vector<1x8x8xbf16>, vector<1x8x8xbf16>, vector<1x8x8xf32> -> vector<1x8x8xf32>
    %cst_62 = arith.constant dense<0xFF800000> : vector<1x8xf32>
    %146 = vector.multi_reduction <maximumf>, %145, %cst_62 [2] : vector<1x8x8xf32> to vector<1x8xf32>
    %147 = vector.shape_cast %146 : vector<1x8xf32> to vector<1x8x1xf32>
    %cst_63 = arith.constant 2.000000e+00 : f32
    %148 = vector.broadcast %cst_63 : f32 to vector<1x8x1xf32>
    %149 = vector.broadcast %147 : vector<1x8x1xf32> to vector<1x8x8xf32>
    %150 = arith.cmpf oeq, %145, %149 : vector<1x8x8xf32>
    %151 = arith.extui %150 : vector<1x8x8xi1> to vector<1x8x8xi32>
    %152 = arith.sitofp %151 : vector<1x8x8xi32> to vector<1x8x8xf32>
    %cst_64 = arith.constant dense<0.000000e+00> : vector<1x8xf32>
    %153 = vector.multi_reduction <add>, %152, %cst_64 [2] : vector<1x8x8xf32> to vector<1x8xf32>
    %154 = vector.shape_cast %153 : vector<1x8xf32> to vector<1x8x1xf32>
    %155 = arith.cmpf ogt, %148, %154 : vector<1x8x1xf32>
    %156 = vector.broadcast %147 : vector<1x8x1xf32> to vector<1x8x8xf32>
    %157 = arith.cmpf oeq, %145, %156 : vector<1x8x8xf32>
    %cst_65 = arith.constant 0xFF800000 : f32
    %158 = vector.broadcast %cst_65 : f32 to vector<1x8x8xf32>
    %159 = arith.select %157, %158, %145 : vector<1x8x8xi1>, vector<1x8x8xf32>
    %cst_66 = arith.constant dense<0xFF800000> : vector<1x8xf32>
    %160 = vector.multi_reduction <maximumf>, %159, %cst_66 [2] : vector<1x8x8xf32> to vector<1x8xf32>
    %161 = vector.shape_cast %160 : vector<1x8xf32> to vector<1x8x1xf32>
    %162 = arith.select %155, %161, %147 : vector<1x8x1xi1>, vector<1x8x1xf32>
    %163 = vector.broadcast %162 : vector<1x8x1xf32> to vector<1x8x8xf32>
    %164 = arith.cmpf olt, %145, %163 : vector<1x8x8xf32>
    %cst_67 = arith.constant 0xFF800000 : f32
    %165 = vector.broadcast %cst_67 : f32 to vector<1x8x8xf32>
    %166 = arith.select %164, %165, %145 : vector<1x8x8xi1>, vector<1x8x8xf32>
    %167 = vector.broadcast %147 : vector<1x8x1xf32> to vector<1x8x8xf32>
    %168 = arith.subf %166, %167 : vector<1x8x8xf32>
    %169 = math.exp %168 : vector<1x8x8xf32>
    %cst_68 = arith.constant dense<0.000000e+00> : vector<1x8xf32>
    %170 = vector.multi_reduction <add>, %169, %cst_68 [2] : vector<1x8x8xf32> to vector<1x8xf32>
    %171 = vector.shape_cast %170 : vector<1x8xf32> to vector<1x8x1xf32>
    %172 = vector.broadcast %171 : vector<1x8x1xf32> to vector<1x8x8xf32>
    %173 = arith.divf %169, %172 : vector<1x8x8xf32>
    %c0_69 = arith.constant 0 : index
    %c3 = arith.constant 3 : index
    %c0_70 = arith.constant 0 : index
    %c0_71 = arith.constant 0 : index
    %174 = vector.load %arg13[%c0_69, %c3, %c0_70, %c0_71] : memref<1x4x8x8xf32, #tpu.memory_space<vmem>>, vector<1x1x8x8xf32>
    %175 = vector.shape_cast %174 : vector<1x1x8x8xf32> to vector<1x8x8xf32>
    %176 = vector.shape_cast %173 : vector<1x8x8xf32> to vector<1x1x8x8xf32>
    tpu.vector_store %arg13[%c0_69, %c3, %c0_70, %c0_71], %176 {strides = array<i32>} : memref<1x4x8x8xf32, #tpu.memory_space<vmem>>, vector<1x1x8x8xf32>,
    %177 = arith.truncf %173 : vector<1x8x8xf32> to vector<1x8x8xbf16>
    %cst_72 = arith.constant dense<0.000000e+00> : vector<1x8x8xf32>
    %178 = tpu.matmul %177, %144, %cst_72 {dimension_numbers = #tpu.dot_dimension_numbers<[2], [1], [1], [2], [0, 0, 0, 1, 1, 2], [0], [0]>} : vector<1x8x8xbf16>, vector<1x8x8xbf16>, vector<1x8x8xf32> -> vector<1x8x8xf32>
    %179 = tpu.concatenate %67, %104, %141, %178 in 2 : vector<1x8x8xf32>, vector<1x8x8xf32>, vector<1x8x8xf32>, vector<1x8x8xf32> -> vector<1x8x32xf32>
    %180 = vector.shape_cast %179 : vector<1x8x32xf32> to vector<8x32xf32>
    %181 = arith.truncf %180 : vector<8x32xf32> to vector<8x32xbf16>
    %c0_73 = arith.constant 0 : index
    %c0_74 = arith.constant 0 : index
    %182 = vector.load %arg10[%c0_73, %c0_74] : memref<32x32xbf16, #tpu.memory_space<vmem>>, vector<32x32xbf16>
    %cst_75 = arith.constant dense<0.000000e+00> : vector<8x32xf32>
    %183 = tpu.matmul %181, %182, %cst_75 {dimension_numbers = #tpu.dot_dimension_numbers<[1], [0], [0], [1], [0, 0, 1, 1], [], []>} : vector<8x32xbf16>, vector<32x32xbf16>, vector<8x32xf32> -> vector<8x32xf32>
    %c0_76 = arith.constant 0 : index
    %c0_77 = arith.constant 0 : index
    %184 = vector.load %arg11[%c0_76, %c0_77] : memref<1x32xf32, #tpu.memory_space<vmem>>, vector<1x32xf32>
    %185 = vector.broadcast %184 : vector<1x32xf32> to vector<8x32xf32>
    %186 = arith.addf %183, %185 : vector<8x32xf32>
    %187 = vector.shape_cast %186 : vector<8x32xf32> to vector<1x8x32xf32>
    %c0_78 = arith.constant 0 : index
    %c0_79 = arith.constant 0 : index
    %c0_80 = arith.constant 0 : index
    %188 = vector.load %arg12[%c0_78, %c0_79, %c0_80] : memref<1x8x32xf32, #tpu.memory_space<vmem>>, vector<1x8x32xf32>
    tpu.vector_store %arg12[%c0_78, %c0_79, %c0_80], %187 {strides = array<i32>} : memref<1x8x32xf32, #tpu.memory_space<vmem>>, vector<1x8x32xf32>,
    return
  }
  func.func @transform_0(%arg0: i32) -> (i32, i32, i32) {
    %c0_i32 = arith.constant 0 : i32
    %c0_i32_0 = arith.constant 0 : i32
    %c0_i32_1 = arith.constant 0 : i32
    return %arg0, %c0_i32, %c0_i32_0 : i32, i32, i32
  }
  func.func @transform_1(%arg0: i32) -> (i32, i32, i32) {
    %c0_i32 = arith.constant 0 : i32
    %c0_i32_0 = arith.constant 0 : i32
    %c0_i32_1 = arith.constant 0 : i32
    return %arg0, %c0_i32, %c0_i32_0 : i32, i32, i32
  }
  func.func @transform_2(%arg0: i32) -> (i32, i32, i32) {
    %c0_i32 = arith.constant 0 : i32
    %c0_i32_0 = arith.constant 0 : i32
    %c0_i32_1 = arith.constant 0 : i32
    return %arg0, %c0_i32, %c0_i32_0 : i32, i32, i32
  }
  func.func @transform_3(%arg0: i32) -> (i32, i32) {
    %c0_i32 = arith.constant 0 : i32
    %c0_i32_0 = arith.constant 0 : i32
    %c0_i32_1 = arith.constant 0 : i32
    return %c0_i32, %c0_i32_0 : i32, i32
  }
  func.func @transform_4(%arg0: i32) -> (i32, i32) {
    %c0_i32 = arith.constant 0 : i32
    %c0_i32_0 = arith.constant 0 : i32
    %c0_i32_1 = arith.constant 0 : i32
    return %c0_i32, %c0_i32_0 : i32, i32
  }
  func.func @transform_5(%arg0: i32) -> (i32, i32) {
    %c0_i32 = arith.constant 0 : i32
    %c0_i32_0 = arith.constant 0 : i32
    %c0_i32_1 = arith.constant 0 : i32
    return %c0_i32, %c0_i32_0 : i32, i32
  }
  func.func @transform_6(%arg0: i32) -> (i32, i32) {
    %c0_i32 = arith.constant 0 : i32
    %c0_i32_0 = arith.constant 0 : i32
    %c0_i32_1 = arith.constant 0 : i32
    return %c0_i32, %c0_i32_0 : i32, i32
  }
  func.func @transform_7(%arg0: i32) -> (i32, i32) {
    %c0_i32 = arith.constant 0 : i32
    %c0_i32_0 = arith.constant 0 : i32
    %c0_i32_1 = arith.constant 0 : i32
    return %c0_i32, %c0_i32_0 : i32, i32
  }
  func.func @transform_8(%arg0: i32) -> (i32, i32) {
    %c0_i32 = arith.constant 0 : i32
    %c0_i32_0 = arith.constant 0 : i32
    %c0_i32_1 = arith.constant 0 : i32
    return %c0_i32, %c0_i32_0 : i32, i32
  }
  func.func @transform_9(%arg0: i32) -> (i32, i32) {
    %c0_i32 = arith.constant 0 : i32
    %c0_i32_0 = arith.constant 0 : i32
    %c0_i32_1 = arith.constant 0 : i32
    return %c0_i32, %c0_i32_0 : i32, i32
  }
  func.func @transform_10(%arg0: i32) -> (i32, i32) {
    %c0_i32 = arith.constant 0 : i32
    %c0_i32_0 = arith.constant 0 : i32
    %c0_i32_1 = arith.constant 0 : i32
    return %c0_i32, %c0_i32_0 : i32, i32
  }
  func.func @transform_11(%arg0: i32) -> (i32, i32, i32) {
    %c0_i32 = arith.constant 0 : i32
    %c0_i32_0 = arith.constant 0 : i32
    %c0_i32_1 = arith.constant 0 : i32
    return %arg0, %c0_i32, %c0_i32_0 : i32, i32, i32
  }
  func.func @transform_12(%arg0: i32) -> (i32, i32, i32, i32) {
    %c0_i32 = arith.constant 0 : i32
    %c0_i32_0 = arith.constant 0 : i32
    %c0_i32_1 = arith.constant 0 : i32
    %c0_i32_2 = arith.constant 0 : i32
    return %arg0, %c0_i32, %c0_i32_0, %c0_i32_1 : i32, i32, i32, i32
  }
}

</mosaic_0001>

<llo_original>
// kernel: tpu_custom_call.1
$region0: #{tpu_custom_call.1}
  #allocation0 [shape = 'u32[]', space=smem, size = 0x4, offset = 0x4, fixed_abs, tag = 'smem constant byte address 0x4 - core index']
  #allocation1 [shape = 'u32[144,128]{1,0:T(1,128)}', space=vmem, size = 0x12000, scoped, tag = 'internal scratch']
  %s0 = inlined_call_operand.hbm [shape: bf16[2,8,32], index: 0, kind: input, shape index: {}]
  %s1 = inlined_call_operand.hbm [shape: bf16[2,8,32], index: 1, kind: input, shape index: {}]
  %s2 = inlined_call_operand.hbm [shape: bf16[2,8,32], index: 2, kind: input, shape index: {}]
  %s3 = inlined_call_operand.hbm [shape: bf16[32,32], index: 3, kind: input, shape index: {}]
  %s4 = inlined_call_operand.vmem [shape: f32[1,32], index: 4, kind: input, shape index: {}]
  %s5 = inlined_call_operand.vmem [shape: bf16[32,32], index: 5, kind: input, shape index: {}]
  %s6 = inlined_call_operand.vmem [shape: f32[1,32], index: 6, kind: input, shape index: {}]
  %s7 = inlined_call_operand.hbm [shape: bf16[32,32], index: 7, kind: input, shape index: {}]
  %s8 = inlined_call_operand.hbm [shape: f32[1,32], index: 8, kind: input, shape index: {}]
  %s9 = inlined_call_operand.vmem [shape: bf16[32,32], index: 9, kind: input, shape index: {}]
  %s10 = inlined_call_operand.vmem [shape: f32[1,32], index: 10, kind: input, shape index: {}]
  %s11 = inlined_call_operand.hbm [shape: f32[2,8,32], index: 11, kind: output, shape index: {0}]
  %s12 = inlined_call_operand.hbm [shape: f32[2,4,8,8], index: 12, kind: output, shape index: {1}]
  %13 = xla_tuple %s11, %s12
  %s14 = sld [smem:[#allocation0]]
  $region109: #{tpu_custom_call.1} parent=0
    _
  %s16 = ssub.s32 1, %s14
  %s17 = scalar_select 0, %s16, %s14
  $region1: #{tpu_custom_call.1} parent=0
    #allocation2 [shape = 'u8[4096]{0}', space=vmem, size = 0x1000, scoped, tag = 'input window, operand 0']
    #allocation3 [shape = 's32[2]{0}', space=sflag, size = 0x8, scoped, tag = 'scoped memory for tpu_custom_call.1']
    #allocation4 [shape = 's32[2]{0}', space=sflag, size = 0x8, scoped, tag = 'scoped memory for tpu_custom_call.1']
    #allocation5 [shape = 'u8[4096]{0}', space=vmem, size = 0x1000, scoped, tag = 'input window, operand 1']
    #allocation6 [shape = 's32[2]{0}', space=sflag, size = 0x8, scoped, tag = 'scoped memory for tpu_custom_call.1']
    #allocation7 [shape = 'u8[4096]{0}', space=vmem, size = 0x1000, scoped, tag = 'input window, operand 2']
    #allocation8 [shape = 'u8[8192]{0}', space=vmem, size = 0x2000, scoped, tag = 'input window, operand 3, single buffered']
    #allocation9 [shape = 's32[1]{0}', space=sflag, size = 0x4, scoped, tag = 'scoped memory for tpu_custom_call.1']
    #allocation10 [shape = 'u8[8192]{0}', space=vmem, size = 0x2000, scoped, tag = 'input window, operand 7, single buffered']
    #allocation11 [shape = 'u8[512]{0}', space=vmem, size = 0x400, scoped, tag = 'input window, operand 8, single buffered']
    #allocation12 [shape = 's32[1]{0}', space=sflag, size = 0x4, scoped, tag = 'scoped memory for tpu_custom_call.1']
    #allocation13 [shape = 'u8[8192]{0}', space=vmem, size = 0x2000, scoped, tag = 'output window, operand 0']
    #allocation14 [shape = 'u8[32768]{0}', space=vmem, size = 0x8000, scoped, tag = 'output window, operand 1']
    #allocation15 [shape = 's32[2]{0}', space=sflag, size = 0x8, scoped, tag = 'scoped memory for tpu_custom_call.1']
    %18 = vsyncpa [#allocation3], 0
    %s19 = scalar_lea.sflag [#allocation3], 1
    %20 = vsyncpa %s19, 0
    %21 = vsyncpa [#allocation6], 0
    %s22 = scalar_lea.sflag [#allocation6], 1
    %23 = vsyncpa %s22, 0
    %24 = vsyncpa [#allocation9], 0
    %25 = vsyncpa [#allocation12], 0
    %26 = vsyncpa [#allocation4], 0
    %s27 = scalar_lea.sflag [#allocation4], 1
    %28 = vsyncpa %s27, 0
    %29 = vsyncpa [#allocation15], 0
    %s30 = scalar_lea.sflag [#allocation15], 1
    %31 = vsyncpa %s30, 0
    loop: start=0, step=1, limit=4
    $region2: #{tpu_custom_call.1} parent=1 // loop_pre_header
      _
    $region3: #{tpu_custom_call.1} parent=1 // loop_header
      %s33 = sphi 0, %s37
      %p34 = scmp.ge.s32.totalorder %s33, 4
      %s43 = sphi 0, %s45
      %s46 = sphi 0, %s43
      %s47 = sphi 0, %s46
      %s63 = sphi 0, %s47
      %s69 = sphi 0, %s71
      %s72 = sphi 0, %s69
      %s73 = sphi 0, %s72
      %s89 = sphi 0, %s73
      %s95 = sphi 0, %s97
      %s98 = sphi 0, %s95
      %s99 = sphi 0, %s98
      %s115 = sphi 0, %s99
      %s119 = sphi 0, %s119
      %s121 = sphi 0, %s119
      %s122 = sphi 0, %s121
      %s136 = sphi 0, %s122
      %s140 = sphi 0, %s140
      %s142 = sphi 0, %s140
      %s143 = sphi 0, %s142
      %s157 = sphi 0, %s143
      %s161 = sphi 0, %s161
      %s163 = sphi 0, %s161
      %s164 = sphi 0, %s163
      %s178 = sphi 0, %s164
      %s182 = sphi 0, %s182
      %s184 = sphi 0, %s182
      %s185 = sphi 0, %s184
      %s199 = sphi 0, %s185
      %s203 = sphi 0, %s203
      %s205 = sphi 0, %s203
      %s206 = sphi 0, %s205
      %s220 = sphi 0, %s206
      %s224 = sphi 0, %s224
      %s226 = sphi 0, %s224
      %s227 = sphi 0, %s226
      %s241 = sphi 0, %s227
      %s245 = sphi 0, %s245
      %s247 = sphi 0, %s245
      %s248 = sphi 0, %s247
      %s262 = sphi 0, %s248
      %s266 = sphi 0, %s266
      %s268 = sphi 0, %s266
      %s269 = sphi 0, %s268
      %s283 = sphi 0, %s269
      %s289 = sphi 0, %s291
      %s292 = sphi 0, %s289
      %s293 = sphi 0, %s292
      %s309 = sphi 0, %s293
      %s315 = sphi 0, %s317
      %s318 = sphi 0, %s315
      %s319 = sphi 0, %s318
      %s335 = sphi 0, %s319
    $region4: #{tpu_custom_call.1} parent=1 // loop_header_branch
      %36 = sbr.rel (%p34) target = $region8
    $region5: #{tpu_custom_call.1} parent=1 // loop_body
      %s38 = ssub.s32 %s33, 1
      %s39 = ssub.s32 %s33, 2
      %s40 = sadd.s32 %s33, 1
      %s41 = ssub.s32 %s33, %s40
      %p42 = scmp.eq.s32.totalorder %s41, 0
      %s44 = sadd.s32 %s43, 1
      %s45 = scalar_select %p42, %s43, %s44
      %p48 = pneg %p42
      %p49 = scmp.eq.s32.totalorder %s33, 1
      %p50 = por %p48, %p49
      %p51 = scmp.ne.s32.totalorder %s43, %s46
      %p52 = scmp.eq.s32.totalorder %s33, 0
      %p53 = por %p51, %p52
      %p54 = scmp.ne.s32.totalorder %s43, %s46
      %p55 = scmp.eq.s32.totalorder %s38, 1
      %p56 = por %p54, %p55
      %p57 = scmp.ne.s32.totalorder %s46, %s47
      %p58 = scmp.eq.s32.totalorder %s38, 0
      %p59 = por %p57, %p58
      %p60 = scmp.ne.s32.totalorder %s46, %s47
      %p61 = scmp.eq.s32.totalorder %s39, 1
      %p62 = por %p60, %p61
      %p64 = scmp.ne.s32.totalorder %s47, %s63
      %p65 = scmp.eq.s32.totalorder %s39, 0
      %p66 = por %p64, %p65
      %s67 = ssub.s32 %s33, %s40
      %p68 = scmp.eq.s32.totalorder %s67, 0
      %s70 = sadd.s32 %s69, 1
      %s71 = scalar_select %p68, %s69, %s70
      %p74 = pneg %p68
      %p75 = scmp.eq.s32.totalorder %s33, 1
      %p76 = por %p74, %p75
      %p77 = scmp.ne.s32.totalorder %s69, %s72
      %p78 = scmp.eq.s32.totalorder %s33, 0
      %p79 = por %p77, %p78
      %p80 = scmp.ne.s32.totalorder %s69, %s72
      %p81 = scmp.eq.s32.totalorder %s38, 1
      %p82 = por %p80, %p81
      %p83 = scmp.ne.s32.totalorder %s72, %s73
      %p84 = scmp.eq.s32.totalorder %s38, 0
      %p85 = por %p83, %p84
      %p86 = scmp.ne.s32.totalorder %s72, %s73
      %p87 = scmp.eq.s32.totalorder %s39, 1
      %p88 = por %p86, %p87
      %p90 = scmp.ne.s32.totalorder %s73, %s89
      %p91 = scmp.eq.s32.totalorder %s39, 0
      %p92 = por %p90, %p91
      %s93 = ssub.s32 %s33, %s40
      %p94 = scmp.eq.s32.totalorder %s93, 0
      %s96 = sadd.s32 %s95, 1
      %s97 = scalar_select %p94, %s95, %s96
      %p100 = pneg %p94
      %p101 = scmp.eq.s32.totalorder %s33, 1
      %p102 = por %p100, %p101
      %p103 = scmp.ne.s32.totalorder %s95, %s98
      %p104 = scmp.eq.s32.totalorder %s33, 0
      %p105 = por %p103, %p104
      %p106 = scmp.ne.s32.totalorder %s95, %s98
      %p107 = scmp.eq.s32.totalorder %s38, 1
      %p108 = por %p106, %p107
      %p109 = scmp.ne.s32.totalorder %s98, %s99
      %p110 = scmp.eq.s32.totalorder %s38, 0
      %p111 = por %p109, %p110
      %p112 = scmp.ne.s32.totalorder %s98, %s99
      %p113 = scmp.eq.s32.totalorder %s39, 1
      %p114 = por %p112, %p113
      %p116 = scmp.ne.s32.totalorder %s99, %s115
      %p117 = scmp.eq.s32.totalorder %s39, 0
      %p118 = por %p116, %p117
      %s120 = sadd.s32 %s119, 1
      %p123 = scmp.eq.s32.totalorder %s33, 1
      %p124 = scmp.ne.s32.totalorder %s119, %s121
      %p125 = scmp.eq.s32.totalorder %s33, 0
      %p126 = por %p124, %p125
      %p127 = scmp.ne.s32.totalorder %s119, %s121
      %p128 = scmp.eq.s32.totalorder %s38, 1
      %p129 = por %p127, %p128
      %p130 = scmp.ne.s32.totalorder %s121, %s122
      %p131 = scmp.eq.s32.totalorder %s38, 0
      %p132 = por %p130, %p131
      %p133 = scmp.ne.s32.totalorder %s121, %s122
      %p134 = scmp.eq.s32.totalorder %s39, 1
      %p135 = por %p133, %p134
      %p137 = scmp.ne.s32.totalorder %s122, %s136
      %p138 = scmp.eq.s32.totalorder %s39, 0
      %p139 = por %p137, %p138
      %s141 = sadd.s32 %s140, 1
      %p144 = scmp.eq.s32.totalorder %s33, 1
      %p145 = scmp.ne.s32.totalorder %s140, %s142
      %p146 = scmp.eq.s32.totalorder %s33, 0
      %p147 = por %p145, %p146
      %p148 = scmp.ne.s32.totalorder %s140, %s142
      %p149 = scmp.eq.s32.totalorder %s38, 1
      %p150 = por %p148, %p149
      %p151 = scmp.ne.s32.totalorder %s142, %s143
      %p152 = scmp.eq.s32.totalorder %s38, 0
      %p153 = por %p151, %p152
      %p154 = scmp.ne.s32.totalorder %s142, %s143
      %p155 = scmp.eq.s32.totalorder %s39, 1
      %p156 = por %p154, %p155
      %p158 = scmp.ne.s32.totalorder %s143, %s157
      %p159 = scmp.eq.s32.totalorder %s39, 0
      %p160 = por %p158, %p159
      %s162 = sadd.s32 %s161, 1
      %p165 = scmp.eq.s32.totalorder %s33, 1
      %p166 = scmp.ne.s32.totalorder %s161, %s163
      %p167 = scmp.eq.s32.totalorder %s33, 0
      %p168 = por %p166, %p167
      %p169 = scmp.ne.s32.totalorder %s161, %s163
      %p170 = scmp.eq.s32.totalorder %s38, 1
      %p171 = por %p169, %p170
      %p172 = scmp.ne.s32.totalorder %s163, %s164
      %p173 = scmp.eq.s32.totalorder %s38, 0
      %p174 = por %p172, %p173
      %p175 = scmp.ne.s32.totalorder %s163, %s164
      %p176 = scmp.eq.s32.totalorder %s39, 1
      %p177 = por %p175, %p176
      %p179 = scmp.ne.s32.totalorder %s164, %s178
      %p180 = scmp.eq.s32.totalorder %s39, 0
      %p181 = por %p179, %p180
      %s183 = sadd.s32 %s182, 1
      %p186 = scmp.eq.s32.totalorder %s33, 1
      %p187 = scmp.ne.s32.totalorder %s182, %s184
      %p188 = scmp.eq.s32.totalorder %s33, 0
      %p189 = por %p187, %p188
      %p190 = scmp.ne.s32.totalorder %s182, %s184
      %p191 = scmp.eq.s32.totalorder %s38, 1
      %p192 = por %p190, %p191
      %p193 = scmp.ne.s32.totalorder %s184, %s185
      %p194 = scmp.eq.s32.totalorder %s38, 0
      %p195 = por %p193, %p194
      %p196 = scmp.ne.s32.totalorder %s184, %s185
      %p197 = scmp.eq.s32.totalorder %s39, 1
      %p198 = por %p196, %p197
      %p200 = scmp.ne.s32.totalorder %s185, %s199
      %p201 = scmp.eq.s32.totalorder %s39, 0
      %p202 = por %p200, %p201
      %s204 = sadd.s32 %s203, 1
      %p207 = scmp.eq.s32.totalorder %s33, 1
      %p208 = scmp.ne.s32.totalorder %s203, %s205
      %p209 = scmp.eq.s32.totalorder %s33, 0
      %p210 = por %p208, %p209
      %p211 = scmp.ne.s32.totalorder %s203, %s205
      %p212 = scmp.eq.s32.totalorder %s38, 1
      %p213 = por %p211, %p212
      %p214 = scmp.ne.s32.totalorder %s205, %s206
      %p215 = scmp.eq.s32.totalorder %s38, 0
      %p216 = por %p214, %p215
      %p217 = scmp.ne.s32.totalorder %s205, %s206
      %p218 = scmp.eq.s32.totalorder %s39, 1
      %p219 = por %p217, %p218
      %p221 = scmp.ne.s32.totalorder %s206, %s220
      %p222 = scmp.eq.s32.totalorder %s39, 0
      %p223 = por %p221, %p222
      %s225 = sadd.s32 %s224, 1
      %p228 = scmp.eq.s32.totalorder %s33, 1
      %p229 = scmp.ne.s32.totalorder %s224, %s226
      %p230 = scmp.eq.s32.totalorder %s33, 0
      %p231 = por %p229, %p230
      %p232 = scmp.ne.s32.totalorder %s224, %s226
      %p233 = scmp.eq.s32.totalorder %s38, 1
      %p234 = por %p232, %p233
      %p235 = scmp.ne.s32.totalorder %s226, %s227
      %p236 = scmp.eq.s32.totalorder %s38, 0
      %p237 = por %p235, %p236
      %p238 = scmp.ne.s32.totalorder %s226, %s227
      %p239 = scmp.eq.s32.totalorder %s39, 1
      %p240 = por %p238, %p239
      %p242 = scmp.ne.s32.totalorder %s227, %s241
      %p243 = scmp.eq.s32.totalorder %s39, 0
      %p244 = por %p242, %p243
      %s246 = sadd.s32 %s245, 1
      %p249 = scmp.eq.s32.totalorder %s33, 1
      %p250 = scmp.ne.s32.totalorder %s245, %s247
      %p251 = scmp.eq.s32.totalorder %s33, 0
      %p252 = por %p250, %p251
      %p253 = scmp.ne.s32.totalorder %s245, %s247
      %p254 = scmp.eq.s32.totalorder %s38, 1
      %p255 = por %p253, %p254
      %p256 = scmp.ne.s32.totalorder %s247, %s248
      %p257 = scmp.eq.s32.totalorder %s38, 0
      %p258 = por %p256, %p257
      %p259 = scmp.ne.s32.totalorder %s247, %s248
      %p260 = scmp.eq.s32.totalorder %s39, 1
      %p261 = por %p259, %p260
      %p263 = scmp.ne.s32.totalorder %s248, %s262
      %p264 = scmp.eq.s32.totalorder %s39, 0
      %p265 = por %p263, %p264
      %s267 = sadd.s32 %s266, 1
      %p270 = scmp.eq.s32.totalorder %s33, 1
      %p271 = scmp.ne.s32.totalorder %s266, %s268
      %p272 = scmp.eq.s32.totalorder %s33, 0
      %p273 = por %p271, %p272
      %p274 = scmp.ne.s32.totalorder %s266, %s268
      %p275 = scmp.eq.s32.totalorder %s38, 1
      %p276 = por %p274, %p275
      %p277 = scmp.ne.s32.totalorder %s268, %s269
      %p278 = scmp.eq.s32.totalorder %s38, 0
      %p279 = por %p277, %p278
      %p280 = scmp.ne.s32.totalorder %s268, %s269
      %p281 = scmp.eq.s32.totalorder %s39, 1
      %p282 = por %p280, %p281
      %p284 = scmp.ne.s32.totalorder %s269, %s283
      %p285 = scmp.eq.s32.totalorder %s39, 0
      %p286 = por %p284, %p285
      %s287 = ssub.s32 %s33, %s40
      %p288 = scmp.eq.s32.totalorder %s287, 0
      %s290 = sadd.s32 %s289, 1
      %s291 = scalar_select %p288, %s289, %s290
      %p294 = pneg %p288
      %p295 = scmp.eq.s32.totalorder %s33, 1
      %p296 = por %p294, %p295
      %p297 = scmp.ne.s32.totalorder %s289, %s292
      %p298 = scmp.eq.s32.totalorder %s33, 0
      %p299 = por %p297, %p298
      %p300 = scmp.ne.s32.totalorder %s289, %s292
      %p301 = scmp.eq.s32.totalorder %s38, 1
      %p302 = por %p300, %p301
      %p303 = scmp.ne.s32.totalorder %s292, %s293
      %p304 = scmp.eq.s32.totalorder %s38, 0
      %p305 = por %p303, %p304
      %p306 = scmp.ne.s32.totalorder %s292, %s293
      %p307 = scmp.eq.s32.totalorder %s39, 1
      %p308 = por %p306, %p307
      %p310 = scmp.ne.s32.totalorder %s293, %s309
      %p311 = scmp.eq.s32.totalorder %s39, 0
      %p312 = por %p310, %p311
      %s313 = ssub.s32 %s33, %s40
      %p314 = scmp.eq.s32.totalorder %s313, 0
      %s316 = sadd.s32 %s315, 1
      %s317 = scalar_select %p314, %s315, %s316
      %p320 = pneg %p314
      %p321 = scmp.eq.s32.totalorder %s33, 1
      %p322 = por %p320, %p321
      %p323 = scmp.ne.s32.totalorder %s315, %s318
      %p324 = scmp.eq.s32.totalorder %s33, 0
      %p325 = por %p323, %p324
      %p326 = scmp.ne.s32.totalorder %s315, %s318
      %p327 = scmp.eq.s32.totalorder %s38, 1
      %p328 = por %p326, %p327
      %p329 = scmp.ne.s32.totalorder %s318, %s319
      %p330 = scmp.eq.s32.totalorder %s38, 0
      %p331 = por %p329, %p330
      %p332 = scmp.ne.s32.totalorder %s318, %s319
      %p333 = scmp.eq.s32.totalorder %s39, 1
      %p334 = por %p332, %p333
      %p336 = scmp.ne.s32.totalorder %s319, %s335
      %p337 = scmp.eq.s32.totalorder %s39, 0
      %p338 = por %p336, %p337
      %p339 = scmp.le.s32.totalorder 1, %s33
      %p340 = scmp.lt.s32.totalorder %s33, 3
      %p341 = pnand %p339, %p340
      %p342 = pneg %p341
      // Predicated region
      $region9: #{tpu_custom_call.1} parent=5 // pred_check
        _
      $region10: #{tpu_custom_call.1} parent=5 // pred_check_branch
        %344 = sbr.rel (%p341) target = $region12
      $region11: #{tpu_custom_call.1} parent=5 // pred_region
        %s345 = ssub.s32 %s33, 1
        // Predicated region
        $region13: #{tpu_custom_call.1} parent=11 // pred_check
          %p346 = pneg %p132
        $region14: #{tpu_custom_call.1} parent=11 // pred_check_branch
          %348 = sbr.rel (%p346) target = $region16
        $region15: #{tpu_custom_call.1} parent=11 // pred_region
          %s350 = ssub.s32 256, 256
          %351 = vsyncadd [#allocation9], %s350
          %s352 = sshll.u32 [#allocation8], 4
          %s353 = int_to_ptr.vmem [resolvable:$true] %s352
          %358 = dma.hbm_to_vmem [thread:$0]  %s3, 256, %s353, [#allocation9], 64, 64, 4
        $region16: #{tpu_custom_call.1} parent=11 // pred_fallthru
          _
        // Predicated region
        $region17: #{tpu_custom_call.1} parent=11 // pred_check
          %p359 = pneg %p153
        $region18: #{tpu_custom_call.1} parent=11 // pred_check_branch
          %361 = sbr.rel (%p359) target = $region20
        $region19: #{tpu_custom_call.1} parent=11 // pred_region
          _
        $region20: #{tpu_custom_call.1} parent=11 // pred_fallthru
          _
        // Predicated region
        $region21: #{tpu_custom_call.1} parent=11 // pred_check
          %p362 = pneg %p174
        $region22: #{tpu_custom_call.1} parent=11 // pred_check_branch
          %364 = sbr.rel (%p362) target = $region24
        $region23: #{tpu_custom_call.1} parent=11 // pred_region
          _
        $region24: #{tpu_custom_call.1} parent=11 // pred_fallthru
          _
        // Predicated region
        $region25: #{tpu_custom_call.1} parent=11 // pred_check
          %p365 = pneg %p195
        $region26: #{tpu_custom_call.1} parent=11 // pred_check_branch
          %367 = sbr.rel (%p365) target = $region28
        $region27: #{tpu_custom_call.1} parent=11 // pred_region
          _
        $region28: #{tpu_custom_call.1} parent=11 // pred_fallthru
          _
        // Predicated region
        $region29: #{tpu_custom_call.1} parent=11 // pred_check
          %p368 = pneg %p216
        $region30: #{tpu_custom_call.1} parent=11 // pred_check_branch
          %370 = sbr.rel (%p368) target = $region32
        $region31: #{tpu_custom_call.1} parent=11 // pred_region
          %s372 = ssub.s32 256, 256
          %373 = vsyncadd [#allocation9], %s372
          %s374 = sshll.u32 [#allocation10], 4
          %s375 = int_to_ptr.vmem [resolvable:$true] %s374
          %380 = dma.hbm_to_vmem [thread:$0]  %s7, 256, %s375, [#allocation9], 64, 64, 4
        $region32: #{tpu_custom_call.1} parent=11 // pred_fallthru
          _
        // Predicated region
        $region33: #{tpu_custom_call.1} parent=11 // pred_check
          %p381 = pneg %p237
        $region34: #{tpu_custom_call.1} parent=11 // pred_check_branch
          %383 = sbr.rel (%p381) target = $region36
        $region35: #{tpu_custom_call.1} parent=11 // pred_region
          %s385 = ssub.s32 16, 16
          %386 = vsyncadd [#allocation12], %s385
          %s388 = sshll.u32 [#allocation11], 4
          %s389 = int_to_ptr.vmem [resolvable:$true] %s388
          %391 = dma.hbm_to_vmem [thread:$0]  %s8, 16, %s389, [#allocation12]
        $region36: #{tpu_custom_call.1} parent=11 // pred_fallthru
          _
        // Predicated region
        $region37: #{tpu_custom_call.1} parent=11 // pred_check
          %p392 = pneg %p258
        $region38: #{tpu_custom_call.1} parent=11 // pred_check_branch
          %394 = sbr.rel (%p392) target = $region40
        $region39: #{tpu_custom_call.1} parent=11 // pred_region
          _
        $region40: #{tpu_custom_call.1} parent=11 // pred_fallthru
          _
        // Predicated region
        $region41: #{tpu_custom_call.1} parent=11 // pred_check
          %p395 = pneg %p279
        $region42: #{tpu_custom_call.1} parent=11 // pred_check_branch
          %397 = sbr.rel (%p395) target = $region44
        $region43: #{tpu_custom_call.1} parent=11 // pred_region
          _
        $region44: #{tpu_custom_call.1} parent=11 // pred_fallthru
          _
      $region12: #{tpu_custom_call.1} parent=5 // pred_fallthru
        _
      %p398 = scmp.lt.s32.totalorder %s33, 2
      // Predicated region
      $region45: #{tpu_custom_call.1} parent=5 // pred_check
        %p399 = pneg %p398
      $region46: #{tpu_custom_call.1} parent=5 // pred_check_branch
        %401 = sbr.rel (%p399) target = $region48
      $region47: #{tpu_custom_call.1} parent=5 // pred_region
        // Predicated region
        $region49: #{tpu_custom_call.1} parent=47 // pred_check
          %p402 = pneg %p53
        $region50: #{tpu_custom_call.1} parent=47 // pred_check_branch
          %404 = sbr.rel (%p402) target = $region52
        $region51: #{tpu_custom_call.1} parent=47 // pred_region
          %s405 = sand.u32 %s43, 1
          %s406 = scalar_lea.sflag [#allocation3], %s405
          %s407 = sand.u32 %s43, 1
          %s408 = smul.addr %s407, 4
          %s409 = scalar_lea.vmem [#allocation2], %s408
          %s411 = ssub.s32 64, 64
          %412 = vsyncadd %s406, %s411
          %s413 = smul.addr %s33, 64
          %s414 = scalar_lea.hbm %s0, %s413
          %s416 = sshll.u32 %s409, 4
          %s417 = int_to_ptr.vmem [resolvable:$true] %s416
          %419 = dma.hbm_to_vmem [thread:$0]  %s414, 64, %s417, %s406
        $region52: #{tpu_custom_call.1} parent=47 // pred_fallthru
          _
        // Predicated region
        $region53: #{tpu_custom_call.1} parent=47 // pred_check
          %p420 = pneg %p79
        $region54: #{tpu_custom_call.1} parent=47 // pred_check_branch
          %422 = sbr.rel (%p420) target = $region56
        $region55: #{tpu_custom_call.1} parent=47 // pred_region
          %s423 = sand.u32 %s33, 1
          %s424 = scalar_lea.sflag [#allocation6], %s423
          %s425 = sand.u32 %s69, 1
          %s426 = smul.addr %s425, 4
          %s427 = scalar_lea.vmem [#allocation5], %s426
          %s429 = ssub.s32 64, 64
          %430 = vsyncadd %s424, %s429
          %s431 = smul.addr %s33, 64
          %s432 = scalar_lea.hbm %s1, %s431
          %s434 = sshll.u32 %s427, 4
          %s435 = int_to_ptr.vmem [resolvable:$true] %s434
          %437 = dma.hbm_to_vmem [thread:$0]  %s432, 64, %s435, %s424
        $region56: #{tpu_custom_call.1} parent=47 // pred_fallthru
          _
        // Predicated region
        $region57: #{tpu_custom_call.1} parent=47 // pred_check
          %p438 = pneg %p105
        $region58: #{tpu_custom_call.1} parent=47 // pred_check_branch
          %440 = sbr.rel (%p438) target = $region60
        $region59: #{tpu_custom_call.1} parent=47 // pred_region
          %s441 = sand.u32 %s33, 1
          %s442 = scalar_lea.sflag [#allocation6], %s441
          %s443 = sand.u32 %s95, 1
          %s444 = smul.addr %s443, 4
          %s445 = scalar_lea.vmem [#allocation7], %s444
          %s447 = ssub.s32 64, 64
          %448 = vsyncadd %s442, %s447
          %s449 = smul.addr %s33, 64
          %s450 = scalar_lea.hbm %s2, %s449
          %s452 = sshll.u32 %s445, 4
          %s453 = int_to_ptr.vmem [resolvable:$true] %s452
          %455 = dma.hbm_to_vmem [thread:$0]  %s450, 64, %s453, %s442
        $region60: #{tpu_custom_call.1} parent=47 // pred_fallthru
          _
      $region48: #{tpu_custom_call.1} parent=5 // pred_fallthru
        _
      %p456 = scmp.le.s32.totalorder 1, %s33
      %p457 = scmp.lt.s32.totalorder %s33, 3
      %p458 = pnand %p456, %p457
      %p459 = pneg %p458
      // Predicated region
      $region61: #{tpu_custom_call.1} parent=5 // pred_check
        _
      $region62: #{tpu_custom_call.1} parent=5 // pred_check_branch
        %461 = sbr.rel (%p458) target = $region64
      $region63: #{tpu_custom_call.1} parent=5 // pred_region
        %s462 = ssub.s32 %s33, 1
        %s463 = sand.u32 %s46, 1
        %s464 = scalar_lea.sflag [#allocation3], %s463
        %s465 = sand.u32 %s46, 1
        %s466 = smul.addr %s465, 4
        %s467 = scalar_lea.vmem [#allocation2], %s466
        // Predicated region
        $region65: #{tpu_custom_call.1} parent=63 // pred_check
          %p468 = pneg %p59
        $region66: #{tpu_custom_call.1} parent=63 // pred_check_branch
          %470 = sbr.rel (%p468) target = $region68
        $region67: #{tpu_custom_call.1} parent=63 // pred_region
          %471 = dma.done %s464, 64
        $region68: #{tpu_custom_call.1} parent=63 // pred_fallthru
          _
        %s472 = sand.u32 %s38, 1
        %s473 = scalar_lea.sflag [#allocation6], %s472
        %s474 = sand.u32 %s72, 1
        %s475 = smul.addr %s474, 4
        %s476 = scalar_lea.vmem [#allocation5], %s475
        // Predicated region
        $region69: #{tpu_custom_call.1} parent=63 // pred_check
          %p477 = pneg %p85
        $region70: #{tpu_custom_call.1} parent=63 // pred_check_branch
          %479 = sbr.rel (%p477) target = $region72
        $region71: #{tpu_custom_call.1} parent=63 // pred_region
          %480 = dma.done %s473, 64
        $region72: #{tpu_custom_call.1} parent=63 // pred_fallthru
          _
        %s481 = sand.u32 %s38, 1
        %s482 = scalar_lea.sflag [#allocation6], %s481
        %s483 = sand.u32 %s98, 1
        %s484 = smul.addr %s483, 4
        %s485 = scalar_lea.vmem [#allocation7], %s484
        // Predicated region
        $region73: #{tpu_custom_call.1} parent=63 // pred_check
          %p486 = pneg %p111
        $region74: #{tpu_custom_call.1} parent=63 // pred_check_branch
          %488 = sbr.rel (%p486) target = $region76
        $region75: #{tpu_custom_call.1} parent=63 // pred_region
          %489 = dma.done %s482, 64
        $region76: #{tpu_custom_call.1} parent=63 // pred_fallthru
          _
        // Predicated region
        $region77: #{tpu_custom_call.1} parent=63 // pred_check
          %p490 = pneg %p132
        $region78: #{tpu_custom_call.1} parent=63 // pred_check_branch
          %492 = sbr.rel (%p490) target = $region80
        $region79: #{tpu_custom_call.1} parent=63 // pred_region
          %493 = dma.done [#allocation9], 256
        $region80: #{tpu_custom_call.1} parent=63 // pred_fallthru
          _
        // Predicated region
        $region81: #{tpu_custom_call.1} parent=63 // pred_check
          %p494 = pneg %p216
        $region82: #{tpu_custom_call.1} parent=63 // pred_check_branch
          %496 = sbr.rel (%p494) target = $region84
        $region83: #{tpu_custom_call.1} parent=63 // pred_region
          %497 = dma.done [#allocation9], 256
        $region84: #{tpu_custom_call.1} parent=63 // pred_fallthru
          _
        // Predicated region
        $region85: #{tpu_custom_call.1} parent=63 // pred_check
          %p498 = pneg %p237
        $region86: #{tpu_custom_call.1} parent=63 // pred_check_branch
          %500 = sbr.rel (%p498) target = $region88
        $region87: #{tpu_custom_call.1} parent=63 // pred_region
          %501 = dma.done [#allocation12], 16
        $region88: #{tpu_custom_call.1} parent=63 // pred_fallthru
          _
        %s502 = sand.u32 %s46, 1
        %s503 = scalar_lea.sflag [#allocation3], %s502
        %s504 = sand.u32 %s46, 1
        %s505 = smul.addr %s504, 4
        %s506 = scalar_lea.vmem [#allocation2], %s505
        %p507 = pneg %p59
        %p508 = pneg %p56
        %s509 = sand.u32 %s38, 1
        %s510 = scalar_lea.sflag [#allocation6], %s509
        %s511 = sand.u32 %s72, 1
        %s512 = smul.addr %s511, 4
        %s513 = scalar_lea.vmem [#allocation5], %s512
        %p514 = pneg %p85
        %p515 = pneg %p82
        %s516 = sand.u32 %s38, 1
        %s517 = scalar_lea.sflag [#allocation6], %s516
        %s518 = sand.u32 %s98, 1
        %s519 = smul.addr %s518, 4
        %s520 = scalar_lea.vmem [#allocation7], %s519
        %p521 = pneg %p111
        %p522 = pneg %p108
        %p523 = pneg %p132
        %p524 = pneg %p129
        %p525 = pneg %p153
        %p526 = pneg %p150
        %p527 = pneg %p174
        %p528 = pneg %p171
        %p529 = pneg %p195
        %p530 = pneg %p192
        %p531 = pneg %p216
        %p532 = pneg %p213
        %p533 = pneg %p237
        %p534 = pneg %p234
        %p535 = pneg %p258
        %p536 = pneg %p255
        %p537 = pneg %p279
        %p538 = pneg %p276
        %p539 = pneg %p305
        %p540 = pneg %p302
        %s541 = sand.u32 %s292, 1
        %s542 = scalar_lea.sflag [#allocation4], %s541
        %s543 = sand.u32 %s292, 1
        %s544 = smul.addr %s543, 8
        %s545 = scalar_lea.vmem [#allocation13], %s544
        %p546 = pneg %p331
        %p547 = pneg %p328
        %s548 = sand.u32 %s318, 1
        %s549 = scalar_lea.sflag [#allocation15], %s548
        %s550 = sand.u32 %s318, 1
        %s551 = smul.addr %s550, 32
        %s552 = scalar_lea.vmem [#allocation14], %s551
        %v554 = vld [vmem:[%s467] sm:$0xf]
        %v555 = vld [vmem:[#allocation8] sm:$0xf]
        %v556 = vld [vmem:[#allocation8 + $0x4] sm:$0xf]
        %v557 = vld [vmem:[#allocation8 + $0x8] sm:$0xf]
        %v558 = vld [vmem:[#allocation8 + $0xc] sm:$0xf]
        %v559 = vld [vmem:[%s4] sm:$0x1]
        %v561 = vlaneseq
        %v562 = vshrl.u32 %v561, 7
        %v563 = vsub.s32 0, %v562
        %v564 = vrot.slane %v559, %v563
        %v570 = vunpack.c.l.b16 %v555
        %v571 = vunpack.c.l.b16 %v556
        %v572 = vunpack.c.l.b16 %v557
        %v573 = vunpack.c.l.b16 %v558
        %v574 = vpack.c.b16 %v571, %v570
        %v575 = vpack.c.b16 %v573, %v572
        %vm578 = vcmask 261120
        %v580 = vsel %vm578, %v554, 0
        %582 = vmatprep.subr.bf16.mxu0 0
        %583 = vmatpush1.bf16.msra.mxu0 %v574
        %584 = vmatprep.subr.bf16.mxu0 0
        %585 = vmatpush1.bf16.msra.mxu0 %v575
        %586 = vmatprep.subr.bf16.mxu0 0
        %587 = vmatpush1.bf16.msra.mxu0 0
        %588 = vmatprep.subr.bf16.mxu0 0
        %589 = vmatpush1.bf16.msra.mxu0 0
        %590 = vmatprep.subr.bf16.mxu0 0
        %591 = vmatpush1.bf16.msra.mxu0 0
        %592 = vmatprep.subr.bf16.mxu0 0
        %593 = vmatpush1.bf16.msra.mxu0 0
        %594 = vmatprep.subr.bf16.mxu0 0
        %595 = vmatpush1.bf16.msra.mxu0 0
        %596 = vmatprep.subr.bf16.mxu0 0
        %597 = vmatpush1.bf16.msra.mxu0 0
        %598 = vmatprep.subr.bf16.mxu0 0
        %599 = vmatpush1.bf16.msra.mxu0 0
        %600 = vmatprep.subr.bf16.mxu0 0
        %601 = vmatpush1.bf16.msra.mxu0 0
        %602 = vmatprep.subr.bf16.mxu0 0
        %603 = vmatpush1.bf16.msra.mxu0 0
        %604 = vmatprep.subr.bf16.mxu0 0
        %605 = vmatpush1.bf16.msra.mxu0 0
        %606 = vmatprep.subr.bf16.mxu0 0
        %607 = vmatpush1.bf16.msra.mxu0 0
        %608 = vmatprep.subr.bf16.mxu0 0
        %609 = vmatpush1.bf16.msra.mxu0 0
        %610 = vmatprep.subr.bf16.mxu0 0
        %611 = vmatpush1.bf16.msra.mxu0 0
        %612 = vmatprep.subr.bf16.mxu0 0
        %613 = vmatpush1.bf16.msra.mxu0 0
        %614 = vmatprep.mubr.bf16.mxu0 0
        %615 = vmatmul.mubr.bf16.gmra.mrb[0].mxu0 %v580
        %v616 = vpop.f32.mrb[0].mxu0
        %v617 = vadd.f32 %v564, %v616
        %v618 = vpop.f32.mrb[0].mxu0
        %v619 = vpop.f32.mrb[0].mxu0
        %v620 = vpop.f32.mrb[0].mxu0
        %621 = vdwg.mxu0
        %v622 = vmax.f32 %v617, 0.0
        %v623 = vld [vmem:[%s476] sm:$0xf]
        %v624 = vld [vmem:[%s5] sm:$0xf]
        %v625 = vld [vmem:[%s5 + $0x4] sm:$0xf]
        %v626 = vld [vmem:[%s5 + $0x8] sm:$0xf]
        %v627 = vld [vmem:[%s5 + $0xc] sm:$0xf]
        %v628 = vld [vmem:[%s6] sm:$0x1]
        %v630 = vlaneseq
        %v631 = vshrl.u32 %v630, 7
        %v632 = vsub.s32 0, %v631
        %v633 = vrot.slane %v628, %v632
        %v639 = vunpack.c.l.b16 %v624
        %v640 = vunpack.c.l.b16 %v625
        %v641 = vunpack.c.l.b16 %v626
        %v642 = vunpack.c.l.b16 %v627
        %v643 = vpack.c.b16 %v640, %v639
        %v644 = vpack.c.b16 %v642, %v641
        %v648 = vsel %vm578, %v623, 0
        %650 = vmatprep.subr.bf16.mxu0 0
        %651 = vmatpush1.bf16.msra.mxu0 %v643
        %652 = vmatprep.subr.bf16.mxu0 0
        %653 = vmatpush1.bf16.msra.mxu0 %v644
        %654 = vmatprep.subr.bf16.mxu0 0
        %655 = vmatpush1.bf16.msra.mxu0 0
        %656 = vmatprep.subr.bf16.mxu0 0
        %657 = vmatpush1.bf16.msra.mxu0 0
        %658 = vmatprep.subr.bf16.mxu0 0
        %659 = vmatpush1.bf16.msra.mxu0 0
        %660 = vmatprep.subr.bf16.mxu0 0
        %661 = vmatpush1.bf16.msra.mxu0 0
        %662 = vmatprep.subr.bf16.mxu0 0
        %663 = vmatpush1.bf16.msra.mxu0 0
        %664 = vmatprep.subr.bf16.mxu0 0
        %665 = vmatpush1.bf16.msra.mxu0 0
        %666 = vmatprep.subr.bf16.mxu0 0
        %667 = vmatpush1.bf16.msra.mxu0 0
        %668 = vmatprep.subr.bf16.mxu0 0
        %669 = vmatpush1.bf16.msra.mxu0 0
        %670 = vmatprep.subr.bf16.mxu0 0
        %671 = vmatpush1.bf16.msra.mxu0 0
        %672 = vmatprep.subr.bf16.mxu0 0
        %673 = vmatpush1.bf16.msra.mxu0 0
        %674 = vmatprep.subr.bf16.mxu0 0
        %675 = vmatpush1.bf16.msra.mxu0 0
        %676 = vmatprep.subr.bf16.mxu0 0
        %677 = vmatpush1.bf16.msra.mxu0 0
        %678 = vmatprep.subr.bf16.mxu0 0
        %679 = vmatpush1.bf16.msra.mxu0 0
        %680 = vmatprep.subr.bf16.mxu0 0
        %681 = vmatpush1.bf16.msra.mxu0 0
        %682 = vmatprep.mubr.bf16.mxu0 0
        %683 = vmatmul.mubr.bf16.gmra.mrb[0].mxu0 %v648
        %v684 = vpop.f32.mrb[0].mxu0
        %v685 = vadd.f32 %v633, %v684
        %v686 = vpop.f32.mrb[0].mxu0
        %v687 = vpop.f32.mrb[0].mxu0
        %v688 = vpop.f32.mrb[0].mxu0
        %689 = vdwg.mxu0
        %v690 = vld [vmem:[%s485] sm:$0xf]
        %v691 = vld [vmem:[#allocation10] sm:$0xf]
        %v692 = vld [vmem:[#allocation10 + $0x4] sm:$0xf]
        %v693 = vld [vmem:[#allocation10 + $0x8] sm:$0xf]
        %v694 = vld [vmem:[#allocation10 + $0xc] sm:$0xf]
        %v695 = vld [vmem:[#allocation11] sm:$0x1]
        %v697 = vlaneseq
        %v698 = vshrl.u32 %v697, 7
        %v699 = vsub.s32 0, %v698
        %v700 = vrot.slane %v695, %v699
        %v706 = vunpack.c.l.b16 %v691
        %v707 = vunpack.c.l.b16 %v692
        %v708 = vunpack.c.l.b16 %v693
        %v709 = vunpack.c.l.b16 %v694
        %v710 = vpack.c.b16 %v707, %v706
        %v711 = vpack.c.b16 %v709, %v708
        %v715 = vsel %vm578, %v690, 0
        %717 = vmatprep.subr.bf16.mxu0 0
        %718 = vmatpush1.bf16.msra.mxu0 %v710
        %719 = vmatprep.subr.bf16.mxu0 0
        %720 = vmatpush1.bf16.msra.mxu0 %v711
        %721 = vmatprep.subr.bf16.mxu0 0
        %722 = vmatpush1.bf16.msra.mxu0 0
        %723 = vmatprep.subr.bf16.mxu0 0
        %724 = vmatpush1.bf16.msra.mxu0 0
        %725 = vmatprep.subr.bf16.mxu0 0
        %726 = vmatpush1.bf16.msra.mxu0 0
        %727 = vmatprep.subr.bf16.mxu0 0
        %728 = vmatpush1.bf16.msra.mxu0 0
        %729 = vmatprep.subr.bf16.mxu0 0
        %730 = vmatpush1.bf16.msra.mxu0 0
        %731 = vmatprep.subr.bf16.mxu0 0
        %732 = vmatpush1.bf16.msra.mxu0 0
        %733 = vmatprep.subr.bf16.mxu0 0
        %734 = vmatpush1.bf16.msra.mxu0 0
        %735 = vmatprep.subr.bf16.mxu0 0
        %736 = vmatpush1.bf16.msra.mxu0 0
        %737 = vmatprep.subr.bf16.mxu0 0
        %738 = vmatpush1.bf16.msra.mxu0 0
        %739 = vmatprep.subr.bf16.mxu0 0
        %740 = vmatpush1.bf16.msra.mxu0 0
        %741 = vmatprep.subr.bf16.mxu0 0
        %742 = vmatpush1.bf16.msra.mxu0 0
        %743 = vmatprep.subr.bf16.mxu0 0
        %744 = vmatpush1.bf16.msra.mxu0 0
        %745 = vmatprep.subr.bf16.mxu0 0
        %746 = vmatpush1.bf16.msra.mxu0 0
        %747 = vmatprep.subr.bf16.mxu0 0
        %748 = vmatpush1.bf16.msra.mxu0 0
        %749 = vmatprep.mubr.bf16.mxu0 0
        %750 = vmatmul.mubr.bf16.gmra.mrb[0].mxu0 %v715
        %v751 = vpop.f32.mrb[0].mxu0
        %v752 = vadd.f32 %v700, %v751
        %v753 = vpop.f32.mrb[0].mxu0
        %v754 = vpop.f32.mrb[0].mxu0
        %v755 = vpop.f32.mrb[0].mxu0
        %756 = vdwg.mxu0
        %v757 = vmax.f32 %v752, 0.0
        %v758 = vpack.c.bf16 %v622, %v622
        %v759 = vpack.c.bf16 %v685, %v685
        %v760 = vpack.c.bf16 %v757, %v757
        %vm761 = vcmask 64512
        %v763 = vsel %vm761, %v758, 0
        %v766 = vsel %vm761, %v759, 0
        %768 = vmatprep.subr.bf16.mxu0 0
        %769 = vmatpush1.bf16.xpose.msra.mxu0 %v766
        %770 = vmatprep.subr.bf16.mxu0 0
        %771 = vmatpush1.bf16.xpose.msra.mxu0 0
        %772 = vmatprep.subr.bf16.mxu0 0
        %773 = vmatpush1.bf16.xpose.msra.mxu0 0
        %774 = vmatprep.subr.bf16.mxu0 0
        %775 = vmatpush1.bf16.xpose.msra.mxu0 0
        %776 = vmatprep.subr.bf16.mxu0 0
        %777 = vmatpush1.bf16.xpose.msra.mxu0 0
        %778 = vmatprep.subr.bf16.mxu0 0
        %779 = vmatpush1.bf16.xpose.msra.mxu0 0
        %780 = vmatprep.subr.bf16.mxu0 0
        %781 = vmatpush1.bf16.xpose.msra.mxu0 0
        %782 = vmatprep.subr.bf16.mxu0 0
        %783 = vmatpush1.bf16.xpose.msra.mxu0 0
        %784 = vmatprep.subr.bf16.mxu0 0
        %785 = vmatpush1.bf16.xpose.msra.mxu0 0
        %786 = vmatprep.subr.bf16.mxu0 0
        %787 = vmatpush1.bf16.xpose.msra.mxu0 0
        %788 = vmatprep.subr.bf16.mxu0 0
        %789 = vmatpush1.bf16.xpose.msra.mxu0 0
        %790 = vmatprep.subr.bf16.mxu0 0
        %791 = vmatpush1.bf16.xpose.msra.mxu0 0
        %792 = vmatprep.subr.bf16.mxu0 0
        %793 = vmatpush1.bf16.xpose.msra.mxu0 0
        %794 = vmatprep.subr.bf16.mxu0 0
        %795 = vmatpush1.bf16.xpose.msra.mxu0 0
        %796 = vmatprep.subr.bf16.mxu0 0
        %797 = vmatpush1.bf16.xpose.msra.mxu0 0
        %798 = vmatprep.subr.bf16.mxu0 0
        %799 = vmatpush1.bf16.xpose.msra.mxu0 0
        %800 = vmatprep.mubr.bf16.mxu0 0
        %801 = vmatmul.mubr.bf16.gmra.mrb[0].mxu0 %v763
        %v802 = vpop.f32.mrb[0].mxu0
        %v803 = vadd.f32 0.0, %v802
        %v804 = vpop.f32.mrb[0].mxu0
        %v805 = vpop.f32.mrb[0].mxu0
        %v806 = vpop.f32.mrb[0].mxu0
        %807 = vdwg.mxu0
        %v808 = vsel %vm761, %v803, -inf
        %809 = vmax.xlane.f32.xlu0 %v808
        %v810 = vpop.xlane.xlu0 %809
        %vm811 = vcmp.eq.f32.partialorder %v803, %v810
        %v812 = vsel %vm811, 1, 0
        %v813 = vcvt.s32.f32 %v812
        %v814 = vsel %vm761, %v813, 0.0
        %815 = vadd.xlane.f32.xlu0 %v814
        %v816 = vpop.xlane.xlu0 %815
        %vm817 = vcmp.gt.f32.partialorder 2.0, %v816
        %v818 = vsel %vm811, -inf, %v803
        %v819 = vsel %vm761, %v818, -inf
        %820 = vmax.xlane.f32.xlu0 %v819
        %v821 = vpop.xlane.xlu0 %820
        %v822 = vsel %vm817, %v821, %v810
        %vm823 = vcmp.lt.f32.partialorder %v803, %v822
        %v824 = vsel %vm823, -inf, %v803
        %v825 = vsub.f32 %v824, %v810
        %v826 = vmul.f32 %v825, 1.442695
        %v827 = vpow.pop %v826
        %v828 = vsel %vm761, %v827, 0.0
        %829 = vadd.xlane.f32.xlu0 %v828
        %v830 = vpop.xlane.xlu0 %829
        %v831 = vrcp.pop %v830
        %v832 = vmul.f32 %v827, %v831
        %833 = vst.msk [vmem:[%s552] sm:$0xff] %vm761, %v832
        %v834 = vpack.c.bf16 %v832, %v832
        %v836 = vsel %vm761, %v834, 0
        %vm838 = vcmask 1043456
        %v840 = vsel %vm838, %v760, 0
        %842 = vmatprep.subr.bf16.mxu0 0
        %843 = vmatpush1.bf16.msra.mxu0 %v840
        %844 = vmatprep.subr.bf16.mxu0 0
        %845 = vmatpush1.bf16.msra.mxu0 0
        %846 = vmatprep.subr.bf16.mxu0 0
        %847 = vmatpush1.bf16.msra.mxu0 0
        %848 = vmatprep.subr.bf16.mxu0 0
        %849 = vmatpush1.bf16.msra.mxu0 0
        %850 = vmatprep.subr.bf16.mxu0 0
        %851 = vmatpush1.bf16.msra.mxu0 0
        %852 = vmatprep.subr.bf16.mxu0 0
        %853 = vmatpush1.bf16.msra.mxu0 0
        %854 = vmatprep.subr.bf16.mxu0 0
        %855 = vmatpush1.bf16.msra.mxu0 0
        %856 = vmatprep.subr.bf16.mxu0 0
        %857 = vmatpush1.bf16.msra.mxu0 0
        %858 = vmatprep.subr.bf16.mxu0 0
        %859 = vmatpush1.bf16.msra.mxu0 0
        %860 = vmatprep.subr.bf16.mxu0 0
        %861 = vmatpush1.bf16.msra.mxu0 0
        %862 = vmatprep.subr.bf16.mxu0 0
        %863 = vmatpush1.bf16.msra.mxu0 0
        %864 = vmatprep.subr.bf16.mxu0 0
        %865 = vmatpush1.bf16.msra.mxu0 0
        %866 = vmatprep.subr.bf16.mxu0 0
        %867 = vmatpush1.bf16.msra.mxu0 0
        %868 = vmatprep.subr.bf16.mxu0 0
        %869 = vmatpush1.bf16.msra.mxu0 0
        %870 = vmatprep.subr.bf16.mxu0 0
        %871 = vmatpush1.bf16.msra.mxu0 0
        %872 = vmatprep.subr.bf16.mxu0 0
        %873 = vmatpush1.bf16.msra.mxu0 0
        %874 = vmatprep.mubr.bf16.mxu0 0
        %875 = vmatmul.mubr.bf16.gmra.mrb[0].mxu0 %v836
        %v876 = vpop.f32.mrb[0].mxu0
        %v877 = vadd.f32 0.0, %v876
        %v878 = vpop.f32.mrb[0].mxu0
        %v879 = vpop.f32.mrb[0].mxu0
        %v880 = vpop.f32.mrb[0].mxu0
        %881 = vdwg.mxu0
        %883 = vrot.lane.b32.xlu0 %v758, 120
        %v884 = vpop.permute.xlu0 %883
        %886 = vrot.lane.b32.xlu0 %v759, 120
        %v887 = vpop.permute.xlu0 %886
        %v889 = vsel %vm761, %v884, 0
        %v892 = vsel %vm761, %v887, 0
        %894 = vmatprep.subr.bf16.mxu0 0
        %895 = vmatpush1.bf16.xpose.msra.mxu0 %v892
        %896 = vmatprep.subr.bf16.mxu0 0
        %897 = vmatpush1.bf16.xpose.msra.mxu0 0
        %898 = vmatprep.subr.bf16.mxu0 0
        %899 = vmatpush1.bf16.xpose.msra.mxu0 0
        %900 = vmatprep.subr.bf16.mxu0 0
        %901 = vmatpush1.bf16.xpose.msra.mxu0 0
        %902 = vmatprep.subr.bf16.mxu0 0
        %903 = vmatpush1.bf16.xpose.msra.mxu0 0
        %904 = vmatprep.subr.bf16.mxu0 0
        %905 = vmatpush1.bf16.xpose.msra.mxu0 0
        %906 = vmatprep.subr.bf16.mxu0 0
        %907 = vmatpush1.bf16.xpose.msra.mxu0 0
        %908 = vmatprep.subr.bf16.mxu0 0
        %909 = vmatpush1.bf16.xpose.msra.mxu0 0
        %910 = vmatprep.subr.bf16.mxu0 0
        %911 = vmatpush1.bf16.xpose.msra.mxu0 0
        %912 = vmatprep.subr.bf16.mxu0 0
        %913 = vmatpush1.bf16.xpose.msra.mxu0 0
        %914 = vmatprep.subr.bf16.mxu0 0
        %915 = vmatpush1.bf16.xpose.msra.mxu0 0
        %916 = vmatprep.subr.bf16.mxu0 0
        %917 = vmatpush1.bf16.xpose.msra.mxu0 0
        %918 = vmatprep.subr.bf16.mxu0 0
        %919 = vmatpush1.bf16.xpose.msra.mxu0 0
        %920 = vmatprep.subr.bf16.mxu0 0
        %921 = vmatpush1.bf16.xpose.msra.mxu0 0
        %922 = vmatprep.subr.bf16.mxu0 0
        %923 = vmatpush1.bf16.xpose.msra.mxu0 0
        %924 = vmatprep.subr.bf16.mxu0 0
        %925 = vmatpush1.bf16.xpose.msra.mxu0 0
        %926 = vmatprep.mubr.bf16.mxu0 0
        %927 = vmatmul.mubr.bf16.gmra.mrb[0].mxu0 %v889
        %v928 = vpop.f32.mrb[0].mxu0
        %v929 = vadd.f32 0.0, %v928
        %v930 = vpop.f32.mrb[0].mxu0
        %v931 = vpop.f32.mrb[0].mxu0
        %v932 = vpop.f32.mrb[0].mxu0
        %933 = vdwg.mxu0
        %v934 = vsel %vm761, %v929, -inf
        %935 = vmax.xlane.f32.xlu0 %v934
        %v936 = vpop.xlane.xlu0 %935
        %vm937 = vcmp.eq.f32.partialorder %v929, %v936
        %v938 = vsel %vm937, 1, 0
        %v939 = vcvt.s32.f32 %v938
        %v940 = vsel %vm761, %v939, 0.0
        %941 = vadd.xlane.f32.xlu0 %v940
        %v942 = vpop.xlane.xlu0 %941
        %vm943 = vcmp.gt.f32.partialorder 2.0, %v942
        %v944 = vsel %vm937, -inf, %v929
        %v945 = vsel %vm761, %v944, -inf
        %946 = vmax.xlane.f32.xlu0 %v945
        %v947 = vpop.xlane.xlu0 %946
        %v948 = vsel %vm943, %v947, %v936
        %vm949 = vcmp.lt.f32.partialorder %v929, %v948
        %v950 = vsel %vm949, -inf, %v929
        %v951 = vsub.f32 %v950, %v936
        %v952 = vmul.f32 %v951, 1.442695
        %v953 = vpow.pop %v952
        %v954 = vsel %vm761, %v953, 0.0
        %955 = vadd.xlane.f32.xlu0 %v954
        %v956 = vpop.xlane.xlu0 %955
        %v957 = vrcp.pop %v956
        %v958 = vmul.f32 %v953, %v957
        %s959 = scalar_lea.vmem %s552, 8 [#allocation14]
        %960 = vst.msk [vmem:[%s959] sm:$0xff] %vm761, %v958
        %v961 = vpack.c.bf16 %v958, %v958
        %963 = vrot.lane.b32.xlu0 %v760, 120
        %v964 = vpop.permute.xlu0 %963
        %v966 = vsel %vm761, %v961, 0
        %v969 = vsel %vm838, %v964, 0
        %971 = vmatprep.subr.bf16.mxu0 0
        %972 = vmatpush1.bf16.msra.mxu0 %v969
        %973 = vmatprep.subr.bf16.mxu0 0
        %974 = vmatpush1.bf16.msra.mxu0 0
        %975 = vmatprep.subr.bf16.mxu0 0
        %976 = vmatpush1.bf16.msra.mxu0 0
        %977 = vmatprep.subr.bf16.mxu0 0
        %978 = vmatpush1.bf16.msra.mxu0 0
        %979 = vmatprep.subr.bf16.mxu0 0
        %980 = vmatpush1.bf16.msra.mxu0 0
        %981 = vmatprep.subr.bf16.mxu0 0
        %982 = vmatpush1.bf16.msra.mxu0 0
        %983 = vmatprep.subr.bf16.mxu0 0
        %984 = vmatpush1.bf16.msra.mxu0 0
        %985 = vmatprep.subr.bf16.mxu0 0
        %986 = vmatpush1.bf16.msra.mxu0 0
        %987 = vmatprep.subr.bf16.mxu0 0
        %988 = vmatpush1.bf16.msra.mxu0 0
        %989 = vmatprep.subr.bf16.mxu0 0
        %990 = vmatpush1.bf16.msra.mxu0 0
        %991 = vmatprep.subr.bf16.mxu0 0
        %992 = vmatpush1.bf16.msra.mxu0 0
        %993 = vmatprep.subr.bf16.mxu0 0
        %994 = vmatpush1.bf16.msra.mxu0 0
        %995 = vmatprep.subr.bf16.mxu0 0
        %996 = vmatpush1.bf16.msra.mxu0 0
        %997 = vmatprep.subr.bf16.mxu0 0
        %998 = vmatpush1.bf16.msra.mxu0 0
        %999 = vmatprep.subr.bf16.mxu0 0
        %1000 = vmatpush1.bf16.msra.mxu0 0
        %1001 = vmatprep.subr.bf16.mxu0 0
        %1002 = vmatpush1.bf16.msra.mxu0 0
        %1003 = vmatprep.mubr.bf16.mxu0 0
        %1004 = vmatmul.mubr.bf16.gmra.mrb[0].mxu0 %v966
        %v1005 = vpop.f32.mrb[0].mxu0
        %v1006 = vadd.f32 0.0, %v1005
        %v1007 = vpop.f32.mrb[0].mxu0
        %v1008 = vpop.f32.mrb[0].mxu0
        %v1009 = vpop.f32.mrb[0].mxu0
        %1010 = vdwg.mxu0
        %1011 = vrot.lane.b32.xlu0 %v758, 112
        %v1012 = vpop.permute.xlu0 %1011
        %1013 = vrot.lane.b32.xlu0 %v759, 112
        %v1014 = vpop.permute.xlu0 %1013
        %v1016 = vsel %vm761, %v1012, 0
        %v1019 = vsel %vm761, %v1014, 0
        %1021 = vmatprep.subr.bf16.mxu0 0
        %1022 = vmatpush1.bf16.xpose.msra.mxu0 %v1019
        %1023 = vmatprep.subr.bf16.mxu0 0
        %1024 = vmatpush1.bf16.xpose.msra.mxu0 0
        %1025 = vmatprep.subr.bf16.mxu0 0
        %1026 = vmatpush1.bf16.xpose.msra.mxu0 0
        %1027 = vmatprep.subr.bf16.mxu0 0
        %1028 = vmatpush1.bf16.xpose.msra.mxu0 0
        %1029 = vmatprep.subr.bf16.mxu0 0
        %1030 = vmatpush1.bf16.xpose.msra.mxu0 0
        %1031 = vmatprep.subr.bf16.mxu0 0
        %1032 = vmatpush1.bf16.xpose.msra.mxu0 0
        %1033 = vmatprep.subr.bf16.mxu0 0
        %1034 = vmatpush1.bf16.xpose.msra.mxu0 0
        %1035 = vmatprep.subr.bf16.mxu0 0
        %1036 = vmatpush1.bf16.xpose.msra.mxu0 0
        %1037 = vmatprep.subr.bf16.mxu0 0
        %1038 = vmatpush1.bf16.xpose.msra.mxu0 0
        %1039 = vmatprep.subr.bf16.mxu0 0
        %1040 = vmatpush1.bf16.xpose.msra.mxu0 0
        %1041 = vmatprep.subr.bf16.mxu0 0
        %1042 = vmatpush1.bf16.xpose.msra.mxu0 0
        %1043 = vmatprep.subr.bf16.mxu0 0
        %1044 = vmatpush1.bf16.xpose.msra.mxu0 0
        %1045 = vmatprep.subr.bf16.mxu0 0
        %1046 = vmatpush1.bf16.xpose.msra.mxu0 0
        %1047 = vmatprep.subr.bf16.mxu0 0
        %1048 = vmatpush1.bf16.xpose.msra.mxu0 0
        %1049 = vmatprep.subr.bf16.mxu0 0
        %1050 = vmatpush1.bf16.xpose.msra.mxu0 0
        %1051 = vmatprep.subr.bf16.mxu0 0
        %1052 = vmatpush1.bf16.xpose.msra.mxu0 0
        %1053 = vmatprep.mubr.bf16.mxu0 0
        %1054 = vmatmul.mubr.bf16.gmra.mrb[0].mxu0 %v1016
        %v1055 = vpop.f32.mrb[0].mxu0
        %v1056 = vadd.f32 0.0, %v1055
        %v1057 = vpop.f32.mrb[0].mxu0
        %v1058 = vpop.f32.mrb[0].mxu0
        %v1059 = vpop.f32.mrb[0].mxu0
        %1060 = vdwg.mxu0
        %v1061 = vsel %vm761, %v1056, -inf
        %1062 = vmax.xlane.f32.xlu0 %v1061
        %v1063 = vpop.xlane.xlu0 %1062
        %vm1064 = vcmp.eq.f32.partialorder %v1056, %v1063
        %v1065 = vsel %vm1064, 1, 0
        %v1066 = vcvt.s32.f32 %v1065
        %v1067 = vsel %vm761, %v1066, 0.0
        %1068 = vadd.xlane.f32.xlu0 %v1067
        %v1069 = vpop.xlane.xlu0 %1068
        %vm1070 = vcmp.gt.f32.partialorder 2.0, %v1069
        %v1071 = vsel %vm1064, -inf, %v1056
        %v1072 = vsel %vm761, %v1071, -inf
        %1073 = vmax.xlane.f32.xlu0 %v1072
        %v1074 = vpop.xlane.xlu0 %1073
        %v1075 = vsel %vm1070, %v1074, %v1063
        %vm1076 = vcmp.lt.f32.partialorder %v1056, %v1075
        %v1077 = vsel %vm1076, -inf, %v1056
        %v1078 = vsub.f32 %v1077, %v1063
        %v1079 = vmul.f32 %v1078, 1.442695
        %v1080 = vpow.pop %v1079
        %v1081 = vsel %vm761, %v1080, 0.0
        %1082 = vadd.xlane.f32.xlu0 %v1081
        %v1083 = vpop.xlane.xlu0 %1082
        %v1084 = vrcp.pop %v1083
        %v1085 = vmul.f32 %v1080, %v1084
        %s1086 = scalar_lea.vmem %s552, 16 [#allocation14]
        %1087 = vst.msk [vmem:[%s1086] sm:$0xff] %vm761, %v1085
        %v1088 = vpack.c.bf16 %v1085, %v1085
        %1089 = vrot.lane.b32.xlu0 %v760, 112
        %v1090 = vpop.permute.xlu0 %1089
        %v1092 = vsel %vm761, %v1088, 0
        %v1095 = vsel %vm838, %v1090, 0
        %1097 = vmatprep.subr.bf16.mxu0 0
        %1098 = vmatpush1.bf16.msra.mxu0 %v1095
        %1099 = vmatprep.subr.bf16.mxu0 0
        %1100 = vmatpush1.bf16.msra.mxu0 0
        %1101 = vmatprep.subr.bf16.mxu0 0
        %1102 = vmatpush1.bf16.msra.mxu0 0
        %1103 = vmatprep.subr.bf16.mxu0 0
        %1104 = vmatpush1.bf16.msra.mxu0 0
        %1105 = vmatprep.subr.bf16.mxu0 0
        %1106 = vmatpush1.bf16.msra.mxu0 0
        %1107 = vmatprep.subr.bf16.mxu0 0
        %1108 = vmatpush1.bf16.msra.mxu0 0
        %1109 = vmatprep.subr.bf16.mxu0 0
        %1110 = vmatpush1.bf16.msra.mxu0 0
        %1111 = vmatprep.subr.bf16.mxu0 0
        %1112 = vmatpush1.bf16.msra.mxu0 0
        %1113 = vmatprep.subr.bf16.mxu0 0
        %1114 = vmatpush1.bf16.msra.mxu0 0
        %1115 = vmatprep.subr.bf16.mxu0 0
        %1116 = vmatpush1.bf16.msra.mxu0 0
        %1117 = vmatprep.subr.bf16.mxu0 0
        %1118 = vmatpush1.bf16.msra.mxu0 0
        %1119 = vmatprep.subr.bf16.mxu0 0
        %1120 = vmatpush1.bf16.msra.mxu0 0
        %1121 = vmatprep.subr.bf16.mxu0 0
        %1122 = vmatpush1.bf16.msra.mxu0 0
        %1123 = vmatprep.subr.bf16.mxu0 0
        %1124 = vmatpush1.bf16.msra.mxu0 0
        %1125 = vmatprep.subr.bf16.mxu0 0
        %1126 = vmatpush1.bf16.msra.mxu0 0
        %1127 = vmatprep.subr.bf16.mxu0 0
        %1128 = vmatpush1.bf16.msra.mxu0 0
        %1129 = vmatprep.mubr.bf16.mxu0 0
        %1130 = vmatmul.mubr.bf16.gmra.mrb[0].mxu0 %v1092
        %v1131 = vpop.f32.mrb[0].mxu0
        %v1132 = vadd.f32 0.0, %v1131
        %v1133 = vpop.f32.mrb[0].mxu0
        %v1134 = vpop.f32.mrb[0].mxu0
        %v1135 = vpop.f32.mrb[0].mxu0
        %1136 = vdwg.mxu0
        %1137 = vrot.lane.b32.xlu0 %v758, 104
        %v1138 = vpop.permute.xlu0 %1137
        %1139 = vrot.lane.b32.xlu0 %v759, 104
        %v1140 = vpop.permute.xlu0 %1139
        %v1142 = vsel %vm761, %v1138, 0
        %v1145 = vsel %vm761, %v1140, 0
        %1147 = vmatprep.subr.bf16.mxu0 0
        %1148 = vmatpush1.bf16.xpose.msra.mxu0 %v1145
        %1149 = vmatprep.subr.bf16.mxu0 0
        %1150 = vmatpush1.bf16.xpose.msra.mxu0 0
        %1151 = vmatprep.subr.bf16.mxu0 0
        %1152 = vmatpush1.bf16.xpose.msra.mxu0 0
        %1153 = vmatprep.subr.bf16.mxu0 0
        %1154 = vmatpush1.bf16.xpose.msra.mxu0 0
        %1155 = vmatprep.subr.bf16.mxu0 0
        %1156 = vmatpush1.bf16.xpose.msra.mxu0 0
        %1157 = vmatprep.subr.bf16.mxu0 0
        %1158 = vmatpush1.bf16.xpose.msra.mxu0 0
        %1159 = vmatprep.subr.bf16.mxu0 0
        %1160 = vmatpush1.bf16.xpose.msra.mxu0 0
        %1161 = vmatprep.subr.bf16.mxu0 0
        %1162 = vmatpush1.bf16.xpose.msra.mxu0 0
        %1163 = vmatprep.subr.bf16.mxu0 0
        %1164 = vmatpush1.bf16.xpose.msra.mxu0 0
        %1165 = vmatprep.subr.bf16.mxu0 0
        %1166 = vmatpush1.bf16.xpose.msra.mxu0 0
        %1167 = vmatprep.subr.bf16.mxu0 0
        %1168 = vmatpush1.bf16.xpose.msra.mxu0 0
        %1169 = vmatprep.subr.bf16.mxu0 0
        %1170 = vmatpush1.bf16.xpose.msra.mxu0 0
        %1171 = vmatprep.subr.bf16.mxu0 0
        %1172 = vmatpush1.bf16.xpose.msra.mxu0 0
        %1173 = vmatprep.subr.bf16.mxu0 0
        %1174 = vmatpush1.bf16.xpose.msra.mxu0 0
        %1175 = vmatprep.subr.bf16.mxu0 0
        %1176 = vmatpush1.bf16.xpose.msra.mxu0 0
        %1177 = vmatprep.subr.bf16.mxu0 0
        %1178 = vmatpush1.bf16.xpose.msra.mxu0 0
        %1179 = vmatprep.mubr.bf16.mxu0 0
        %1180 = vmatmul.mubr.bf16.gmra.mrb[0].mxu0 %v1142
        %v1181 = vpop.f32.mrb[0].mxu0
        %v1182 = vadd.f32 0.0, %v1181
        %v1183 = vpop.f32.mrb[0].mxu0
        %v1184 = vpop.f32.mrb[0].mxu0
        %v1185 = vpop.f32.mrb[0].mxu0
        %1186 = vdwg.mxu0
        %v1187 = vsel %vm761, %v1182, -inf
        %1188 = vmax.xlane.f32.xlu0 %v1187
        %v1189 = vpop.xlane.xlu0 %1188
        %vm1190 = vcmp.eq.f32.partialorder %v1182, %v1189
        %v1191 = vsel %vm1190, 1, 0
        %v1192 = vcvt.s32.f32 %v1191
        %v1193 = vsel %vm761, %v1192, 0.0
        %1194 = vadd.xlane.f32.xlu0 %v1193
        %v1195 = vpop.xlane.xlu0 %1194
        %vm1196 = vcmp.gt.f32.partialorder 2.0, %v1195
        %v1197 = vsel %vm1190, -inf, %v1182
        %v1198 = vsel %vm761, %v1197, -inf
        %1199 = vmax.xlane.f32.xlu0 %v1198
        %v1200 = vpop.xlane.xlu0 %1199
        %v1201 = vsel %vm1196, %v1200, %v1189
        %vm1202 = vcmp.lt.f32.partialorder %v1182, %v1201
        %v1203 = vsel %vm1202, -inf, %v1182
        %v1204 = vsub.f32 %v1203, %v1189
        %v1205 = vmul.f32 %v1204, 1.442695
        %v1206 = vpow.pop %v1205
        %v1207 = vsel %vm761, %v1206, 0.0
        %1208 = vadd.xlane.f32.xlu0 %v1207
        %v1209 = vpop.xlane.xlu0 %1208
        %v1210 = vrcp.pop %v1209
        %v1211 = vmul.f32 %v1206, %v1210
        %s1212 = scalar_lea.vmem %s552, 24 [#allocation14]
        %1213 = vst.msk [vmem:[%s1212] sm:$0xff] %vm761, %v1211
        %v1214 = vpack.c.bf16 %v1211, %v1211
        %1215 = vrot.lane.b32.xlu0 %v760, 104
        %v1216 = vpop.permute.xlu0 %1215
        %v1218 = vsel %vm761, %v1214, 0
        %v1221 = vsel %vm838, %v1216, 0
        %1223 = vmatprep.subr.bf16.mxu0 0
        %1224 = vmatpush1.bf16.msra.mxu0 %v1221
        %1225 = vmatprep.subr.bf16.mxu0 0
        %1226 = vmatpush1.bf16.msra.mxu0 0
        %1227 = vmatprep.subr.bf16.mxu0 0
        %1228 = vmatpush1.bf16.msra.mxu0 0
        %1229 = vmatprep.subr.bf16.mxu0 0
        %1230 = vmatpush1.bf16.msra.mxu0 0
        %1231 = vmatprep.subr.bf16.mxu0 0
        %1232 = vmatpush1.bf16.msra.mxu0 0
        %1233 = vmatprep.subr.bf16.mxu0 0
        %1234 = vmatpush1.bf16.msra.mxu0 0
        %1235 = vmatprep.subr.bf16.mxu0 0
        %1236 = vmatpush1.bf16.msra.mxu0 0
        %1237 = vmatprep.subr.bf16.mxu0 0
        %1238 = vmatpush1.bf16.msra.mxu0 0
        %1239 = vmatprep.subr.bf16.mxu0 0
        %1240 = vmatpush1.bf16.msra.mxu0 0
        %1241 = vmatprep.subr.bf16.mxu0 0
        %1242 = vmatpush1.bf16.msra.mxu0 0
        %1243 = vmatprep.subr.bf16.mxu0 0
        %1244 = vmatpush1.bf16.msra.mxu0 0
        %1245 = vmatprep.subr.bf16.mxu0 0
        %1246 = vmatpush1.bf16.msra.mxu0 0
        %1247 = vmatprep.subr.bf16.mxu0 0
        %1248 = vmatpush1.bf16.msra.mxu0 0
        %1249 = vmatprep.subr.bf16.mxu0 0
        %1250 = vmatpush1.bf16.msra.mxu0 0
        %1251 = vmatprep.subr.bf16.mxu0 0
        %1252 = vmatpush1.bf16.msra.mxu0 0
        %1253 = vmatprep.subr.bf16.mxu0 0
        %1254 = vmatpush1.bf16.msra.mxu0 0
        %1255 = vmatprep.mubr.bf16.mxu0 0
        %1256 = vmatmul.mubr.bf16.gmra.mrb[0].mxu0 %v1218
        %v1257 = vpop.f32.mrb[0].mxu0
        %v1258 = vadd.f32 0.0, %v1257
        %v1259 = vpop.f32.mrb[0].mxu0
        %v1260 = vpop.f32.mrb[0].mxu0
        %v1261 = vpop.f32.mrb[0].mxu0
        %1262 = vdwg.mxu0
        %1264 = vrot.lane.b32.xlu0 %v1006, 8
        %v1265 = vpop.permute.xlu0 %1264
        %1268 = vrot.lane.b32.xlu0 %v1132, 16
        %v1269 = vpop.permute.xlu0 %1268
        %1272 = vrot.lane.b32.xlu0 %v1258, 24
        %v1273 = vpop.permute.xlu0 %1272
        %v1275 = vsel %vm761, %v877, %v1265
        %vm1276 = vcmask 130048
        %v1277 = vsel %vm1276, %v1275, %v1269
        %vm1278 = vcmask 195584
        %v1279 = vsel %vm1278, %v1277, %v1273
        %v1280 = vpack.c.bf16 %v1279, %v1279
        %v1281 = vld [vmem:[%s9] sm:$0xf]
        %v1282 = vld [vmem:[%s9 + $0x4] sm:$0xf]
        %v1283 = vld [vmem:[%s9 + $0x8] sm:$0xf]
        %v1284 = vld [vmem:[%s9 + $0xc] sm:$0xf]
        %v1285 = vld [vmem:[%s10] sm:$0x1]
        %v1287 = vlaneseq
        %v1288 = vshrl.u32 %v1287, 7
        %v1289 = vsub.s32 0, %v1288
        %v1290 = vrot.slane %v1285, %v1289
        %v1296 = vunpack.c.l.b16 %v1281
        %v1297 = vunpack.c.l.b16 %v1282
        %v1298 = vunpack.c.l.b16 %v1283
        %v1299 = vunpack.c.l.b16 %v1284
        %v1300 = vpack.c.b16 %v1297, %v1296
        %v1301 = vpack.c.b16 %v1299, %v1298
        %v1305 = vsel %vm578, %v1280, 0
        %1307 = vmatprep.subr.bf16.mxu0 0
        %1308 = vmatpush1.bf16.msra.mxu0 %v1300
        %1309 = vmatprep.subr.bf16.mxu0 0
        %1310 = vmatpush1.bf16.msra.mxu0 %v1301
        %1311 = vmatprep.subr.bf16.mxu0 0
        %1312 = vmatpush1.bf16.msra.mxu0 0
        %1313 = vmatprep.subr.bf16.mxu0 0
        %1314 = vmatpush1.bf16.msra.mxu0 0
        %1315 = vmatprep.subr.bf16.mxu0 0
        %1316 = vmatpush1.bf16.msra.mxu0 0
        %1317 = vmatprep.subr.bf16.mxu0 0
        %1318 = vmatpush1.bf16.msra.mxu0 0
        %1319 = vmatprep.subr.bf16.mxu0 0
        %1320 = vmatpush1.bf16.msra.mxu0 0
        %1321 = vmatprep.subr.bf16.mxu0 0
        %1322 = vmatpush1.bf16.msra.mxu0 0
        %1323 = vmatprep.subr.bf16.mxu0 0
        %1324 = vmatpush1.bf16.msra.mxu0 0
        %1325 = vmatprep.subr.bf16.mxu0 0
        %1326 = vmatpush1.bf16.msra.mxu0 0
        %1327 = vmatprep.subr.bf16.mxu0 0
        %1328 = vmatpush1.bf16.msra.mxu0 0
        %1329 = vmatprep.subr.bf16.mxu0 0
        %1330 = vmatpush1.bf16.msra.mxu0 0
        %1331 = vmatprep.subr.bf16.mxu0 0
        %1332 = vmatpush1.bf16.msra.mxu0 0
        %1333 = vmatprep.subr.bf16.mxu0 0
        %1334 = vmatpush1.bf16.msra.mxu0 0
        %1335 = vmatprep.subr.bf16.mxu0 0
        %1336 = vmatpush1.bf16.msra.mxu0 0
        %1337 = vmatprep.subr.bf16.mxu0 0
        %1338 = vmatpush1.bf16.msra.mxu0 0
        %1339 = vmatprep.mubr.bf16.mxu0 0
        %1340 = vmatmul.mubr.bf16.gmra.mrb[0].mxu0 %v1305
        %v1341 = vpop.f32.mrb[0].mxu0
        %v1342 = vadd.f32 %v1290, %v1341
        %v1343 = vpop.f32.mrb[0].mxu0
        %v1344 = vpop.f32.mrb[0].mxu0
        %v1345 = vpop.f32.mrb[0].mxu0
        %1346 = vdwg.mxu0
        %1347 = vst.msk [vmem:[%s545] sm:$0xff] %vm578, %v1342
        %s1348 = sand.u32 %s292, 1
        %s1349 = scalar_lea.sflag [#allocation4], %s1348
        %s1350 = sand.u32 %s292, 1
        %s1351 = smul.addr %s1350, 8
        %s1352 = scalar_lea.vmem [#allocation13], %s1351
        %s1353 = sand.u32 %s318, 1
        %s1354 = scalar_lea.sflag [#allocation15], %s1353
        %s1355 = sand.u32 %s318, 1
        %s1356 = smul.addr %s1355, 32
        %s1357 = scalar_lea.vmem [#allocation14], %s1356
        // Predicated region
        $region89: #{tpu_custom_call.1} parent=63 // pred_check
          %p1358 = pneg %p302
        $region90: #{tpu_custom_call.1} parent=63 // pred_check_branch
          %1360 = sbr.rel (%p1358) target = $region92
        $region91: #{tpu_custom_call.1} parent=63 // pred_region
          %s1362 = ssub.s32 128, 128
          %1363 = vsyncadd %s1349, %s1362
          %s1364 = smul.addr %s38, 128
          %s1365 = scalar_lea.hbm %s11, %s1364
          %s1367 = sshll.u32 %s1352, 4
          %s1368 = int_to_ptr.vmem [resolvable:$true] %s1367
          %1370 = dma.vmem_to_hbm [thread:$0]  %s1368, 128, %s1365, %s1349
        $region92: #{tpu_custom_call.1} parent=63 // pred_fallthru
          _
        // Predicated region
        $region93: #{tpu_custom_call.1} parent=63 // pred_check
          %p1371 = pneg %p328
        $region94: #{tpu_custom_call.1} parent=63 // pred_check_branch
          %1373 = sbr.rel (%p1371) target = $region96
        $region95: #{tpu_custom_call.1} parent=63 // pred_region
          %s1375 = ssub.s32 512, 512
          %1376 = vsyncadd %s1354, %s1375
          %s1377 = smul.addr %s38, 4
          %s1378 = smul.addr %s1377, 128
          %s1379 = scalar_lea.hbm %s12, %s1378
          %s1380 = sshll.u32 %s1357, 4
          %s1381 = int_to_ptr.vmem [resolvable:$true] %s1380
          %1386 = dma.vmem_to_hbm [thread:$0]  %s1381, 512, %s1379, %s1354, 128, 128, 8
        $region96: #{tpu_custom_call.1} parent=63 // pred_fallthru
          _
      $region64: #{tpu_custom_call.1} parent=5 // pred_fallthru
        _
      %p1387 = scmp.le.s32.totalorder 2, %s33
      // Predicated region
      $region97: #{tpu_custom_call.1} parent=5 // pred_check
        %p1388 = pneg %p1387
      $region98: #{tpu_custom_call.1} parent=5 // pred_check_branch
        %1390 = sbr.rel (%p1388) target = $region100
      $region99: #{tpu_custom_call.1} parent=5 // pred_region
        %s1391 = ssub.s32 %s33, 2
        // Predicated region
        $region101: #{tpu_custom_call.1} parent=99 // pred_check
          %p1392 = pneg %p308
        $region102: #{tpu_custom_call.1} parent=99 // pred_check_branch
          %1394 = sbr.rel (%p1392) target = $region104
        $region103: #{tpu_custom_call.1} parent=99 // pred_region
          %s1395 = sand.u32 %s293, 1
          %s1396 = scalar_lea.sflag [#allocation4], %s1395
          %s1397 = sand.u32 %s293, 1
          %s1398 = smul.addr %s1397, 8
          %s1399 = scalar_lea.vmem [#allocation13], %s1398
          %1400 = dma.done %s1396, 128
        $region104: #{tpu_custom_call.1} parent=99 // pred_fallthru
          _
        // Predicated region
        $region105: #{tpu_custom_call.1} parent=99 // pred_check
          %p1401 = pneg %p334
        $region106: #{tpu_custom_call.1} parent=99 // pred_check_branch
          %1403 = sbr.rel (%p1401) target = $region108
        $region107: #{tpu_custom_call.1} parent=99 // pred_region
          %s1404 = sand.u32 %s319, 1
          %s1405 = scalar_lea.sflag [#allocation15], %s1404
          %s1406 = sand.u32 %s319, 1
          %s1407 = smul.addr %s1406, 32
          %s1408 = scalar_lea.vmem [#allocation14], %s1407
          %1409 = dma.done %s1405, 512
        $region108: #{tpu_custom_call.1} parent=99 // pred_fallthru
          _
      $region100: #{tpu_custom_call.1} parent=5 // pred_fallthru
        _
    $region6: #{tpu_custom_call.1} parent=1 // loop_footer
      %s37 = sadd.s32 1, %s33
    $region7: #{tpu_custom_call.1} parent=1 // loop_footer_branch
      %32 = sbr.rel target = $region3
    $region8: #{tpu_custom_call.1} parent=1 // loop_exit
      _
    %1410 = vsyncpa [#allocation3], 1
    %s1411 = scalar_lea.sflag [#allocation3], 1
    %1412 = vsyncpa %s1411, 1
    %1413 = vsyncpa [#allocation6], 1
    %s1414 = scalar_lea.sflag [#allocation6], 1
    %1415 = vsyncpa %s1414, 1
    %1416 = vsyncpa [#allocation9], 1
    %1417 = vsyncpa [#allocation12], 1
    %1418 = vsyncpa [#allocation4], 1
    %s1419 = scalar_lea.sflag [#allocation4], 1
    %1420 = vsyncpa %s1419, 1
    %1421 = vsyncpa [#allocation15], 1
    %s1422 = scalar_lea.sflag [#allocation15], 1
    %1423 = vsyncpa %s1422, 1

</llo_original>
